<compile_context>
chip_gen: v5e
topology: v5e:2x2
jax: 0.10.0
libtpu: 0.0.40
codegen_flags: <defaults>
</compile_context>

<pallas_src>
import jax
import jax.numpy as jnp
from jax import lax
from jax.experimental import pallas as pl
from jax.experimental.pallas import tpu as pltpu

SUB = 8  # timesteps per sub-chunk == sublane depth -> full-sublane output stores


def _round_up(x, m):
    return ((x + m - 1) // m) * m


def encoder_rnn_forward(tokens, params, *, time_chunk=128, batch_shards=None,
                        use_bf16_matmul=False):
    """tokens: int32 [B, T].  Returns (output [B, T, H] batch-first, hidden [1, B, H])."""
    B, T = tokens.shape
    emb = params["embedding"].astype(jnp.float32)     # [V, H]
    w_ih = params["w_ih"].astype(jnp.float32)         # [3H, H]  (PyTorch layout, rows r|z|n)
    w_hh = params["w_hh"].astype(jnp.float32)         # [3H, H]
    b_ih = params["b_ih"].astype(jnp.float32)         # [3H]
    b_hh = params["b_hh"].astype(jnp.float32)         # [3H]
    V, H = emb.shape

    if T == 0:  # guard: final hidden would otherwise never be initialized
        return jnp.zeros((B, 0, H), jnp.float32), jnp.zeros((1, B, H), jnp.float32)

    # ---------------- megacore batch sharding (v7x: one shard per TensorCore) ------------------
    if batch_shards is None:
        batch_shards = 2 if (B % 16 == 0) else 1      # keeps bs % 8 == 0 (sublane aligned)
    assert B % batch_shards == 0
    bs = B // batch_shards
    assert batch_shards == 1 or bs % 8 == 0, "batch shards must keep sublane-aligned blocks"

    # ---------------- time-chunk sizing from a VMEM streaming budget ---------------------------
    lane_h = _round_up(H, 128)
    lane_3h = _round_up(3 * H, 128)
    tc = min(_round_up(T, SUB), _round_up(time_chunk, SUB))

    def _streamed_bytes(tc_):
        # double-buffered GI input block + double-buffered output block (f32)
        return 2 * 4 * (tc_ * max(bs, 8) * lane_3h + bs * tc_ * lane_h)

    while tc > SUB and _streamed_bytes(tc) > (24 << 20):
        tc = max(SUB, tc // 2)
    t_pad = _round_up(T, tc)
    num_chunks = t_pad // tc
    needs_mask = t_pad != T

    # ---------------- glue (XLA): fold Embedding + input projection + foldable biases ----------
    # Dropout: identity in eval mode.
    # r = sig(gi_r + h@Whh_r), z = sig(gi_z + h@Whh_z), n = tanh(gi_n + r*(h@Whh_n + b_hn))
    # so b_ih (all) and b_hh[r,z] fold into GI; only b_hn stays in the kernel.
    bias_fold = b_ih + jnp.concatenate([b_hh[: 2 * H], jnp.zeros((H,), jnp.float32)])
    tok_tm = tokens.T                                   # [T, B]  time-major for leading-axis reads
    if B * T >= V:
        proj_table = emb @ w_ih.T + bias_fold[None, :]  # [V, 3H]  one-time table
        gi = proj_table[tok_tm]                         # [T, B, 3H]
    else:
        gi = emb[tok_tm] @ w_ih.T + bias_fold[None, None, :]   # [T, B, 3H]
    if t_pad != T:
        gi = jnp.pad(gi, ((0, t_pad - T), (0, 0), (0, 0)))

    # ---------------- Pallas kernel: the truly sequential recurrence ---------------------------
    def kernel(gi_ref, whh_ref, bhn_ref, out_ref, hid_ref, slab_ref, h_ref):
        chunk = pl.program_id(1)

        @pl.when(chunk == 0)
        def _():
            h_ref[...] = jnp.zeros_like(h_ref)          # PyTorch default h0 = 0

        mm_dtype = jnp.bfloat16 if use_bf16_matmul else jnp.float32
        whh_rz = whh_ref[:, : 2 * H].astype(mm_dtype)   # [H, 2H] hoisted, resident across chunk
        whh_n = whh_ref[:, 2 * H:].astype(mm_dtype)     # [H, H]
        bhn = jnp.broadcast_to(bhn_ref[...], (bs, H))   # hoisted broadcast (not re-emitted/iter)
        t_base = chunk * tc

        def sub_chunk(s, h):
            base = pl.multiple_of(s * SUB, SUB)
            for j in range(SUB):                        # static unroll=8 inside the fori body
                gi_t = gi_ref[base + j]                 # [bs, 3H] tile-aligned dynamic load
                h_mm = h.astype(mm_dtype)
                # split dot: r/z EUP work overlaps the n-slice MXU push
                gh_rz = jnp.dot(h_mm, whh_rz, preferred_element_type=jnp.float32)  # [bs, 2H]
                gh_n = jnp.dot(h_mm, whh_n, preferred_element_type=jnp.float32)    # [bs, H]
                r = jax.nn.sigmoid(gi_t[:, :H] + gh_rz[:, :H])
                z = jax.nn.sigmoid(gi_t[:, H:2 * H] + gh_rz[:, H:])
                n = jnp.tanh(gi_t[:, 2 * H:] + r * (gh_n + bhn))
                h_new = n + z * (h - n)
                if needs_mask:                          # static: only when T was padded
                    h_new = jnp.where(t_base + base + j < T, h_new, h)
                slab_ref[:, j, :] = h_new               # small hot VMEM slab
                h = h_new
            # one aligned, full-sublane store per 8 timesteps (no masked vst per step)
            out_ref[:, pl.ds(base, SUB), :] = slab_ref[...]
            return h

        h_last = lax.fori_loop(0, tc // SUB, sub_chunk, h_ref[...])
        h_ref[...] = h_last

        @pl.when(chunk == num_chunks - 1)
        def _():
            hid_ref[...] = h_last

    compiler_kwargs = dict(dimension_semantics=("parallel", "arbitrary"))
    resident_bytes = (4 * 2 * (_round_up(H, 8) * lane_3h + 8 * lane_h + max(bs, 8) * lane_h)
                      + 4 * (bs * SUB * lane_h + max(bs, 8) * lane_h))
    total_est = _streamed_bytes(tc) + resident_bytes
    if total_est > (24 << 20):                          # only override when defaults may not fit
        compiler_kwargs["vmem_limit_bytes"] = int(min(total_est + (16 << 20), 64 << 20))

    out_pad, h_last = pl.pallas_call(
        kernel,
        out_shape=(
            jax.ShapeDtypeStruct((B, t_pad, H), jnp.float32),   # output sequence (batch-first)
            jax.ShapeDtypeStruct((B, H), jnp.float32),          # final hidden
        ),
        grid_spec=pltpu.PrefetchScalarGridSpec(
            num_scalar_prefetch=0,
            grid=(batch_shards, num_chunks),
            in_specs=[
                pl.BlockSpec((tc, bs, 3 * H), lambda b, c: (c, b, 0)),   # GI chunk (time-major)
                pl.BlockSpec((H, 3 * H), lambda b, c: (0, 0)),           # W_hh^T (constant idx)
                pl.BlockSpec((1, H), lambda b, c: (0, 0)),               # b_hn   (constant idx)
            ],
            out_specs=[
                pl.BlockSpec((bs, tc, H), lambda b, c: (b, c, 0)),       # lane-dense output slab
                pl.BlockSpec((bs, H), lambda b, c: (b, 0)),              # final hidden
            ],
            scratch_shapes=[
                pltpu.VMEM((bs, SUB, H), jnp.float32),                   # 8-step output slab
                pltpu.VMEM((bs, H), jnp.float32),                        # carried hidden state
            ],
        ),
        compiler_params=pltpu.CompilerParams(**compiler_kwargs),
    )(gi, w_hh.T, b_hh[2 * H:].reshape(1, H))

    output = out_pad[:, :T, :] if needs_mask else out_pad
    hidden = h_last[None, :, :]                         # [1, B, H] like nn.GRU
    return output, hidden


def encoder_rnn_reference(tokens, params):
    """Pure-JAX (lax.scan) reference with PyTorch GRU semantics, for correctness checking."""
    E = params["embedding"].astype(jnp.float32)
    w_ih = params["w_ih"].astype(jnp.float32)
    w_hh = params["w_hh"].astype(jnp.float32)
    b_ih = params["b_ih"].astype(jnp.float32)
    b_hh = params["b_hh"].astype(jnp.float32)
    H = w_hh.shape[1]
    x = E[tokens]                                       # [B, T, H]

    def step(h, x_t):
        gi = x_t @ w_ih.T + b_ih
        gh = h @ w_hh.T + b_hh
        r = jax.nn.sigmoid(gi[:, :H] + gh[:, :H])
        z = jax.nn.sigmoid(gi[:, H:2 * H] + gh[:, H:2 * H])
        n = jnp.tanh(gi[:, 2 * H:] + r * gh[:, 2 * H:])
        h_new = (1.0 - z) * n + z * h
        return h_new, h_new

    h0 = jnp.zeros((tokens.shape[0], H), jnp.float32)
    h_last, ys = lax.scan(step, h0, jnp.swapaxes(x, 0, 1))
    return jnp.swapaxes(ys, 0, 1), h_last[None, :, :]


def init_params(key, input_size, hidden_size):
    k_emb, k_wih, k_whh, k_bih, k_bhh = jax.random.split(key, 5)
    bound = 1.0 / jnp.sqrt(hidden_size)
    return {
        "embedding": jax.random.normal(k_emb, (input_size, hidden_size), jnp.float32),
        "w_ih": jax.random.uniform(k_wih, (3 * hidden_size, hidden_size),
                                   jnp.float32, -bound, bound),
        "w_hh": jax.random.uniform(k_whh, (3 * hidden_size, hidden_size),
                                   jnp.float32, -bound, bound),
        "b_ih": jax.random.uniform(k_bih, (3 * hidden_size,), jnp.float32, -bound, bound),
        "b_hh": jax.random.uniform(k_bhh, (3 * hidden_size,), jnp.float32, -bound, bound),
    }


if __name__ == "__main__":
    B, T, V, H = 2, 8, 20, 128   # hidden_size = 128 per the PyTorch module spec

    key = jax.random.PRNGKey(0)
    k_tok, k_par = jax.random.split(key)
    tokens = jax.random.randint(k_tok, (B, T), 0, V, dtype=jnp.int32)
    params = init_params(k_par, V, H)

    output, hidden = jax.jit(encoder_rnn_forward)(tokens, params)
    jax.block_until_ready((output, hidden))

    assert output.shape == (B, T, H)
    assert hidden.shape == (1, B, H)

    # Correctness cross-check against a pure-JAX scan reference (tolerance covers MXU precision).
    ref_out, ref_hid = jax.jit(encoder_rnn_reference)(tokens, params)
    jax.block_until_ready((ref_out, ref_hid))
    assert jnp.allclose(output, ref_out, atol=2e-2, rtol=2e-2), \
        float(jnp.max(jnp.abs(output - ref_out)))
    assert jnp.allclose(hidden, ref_hid, atol=2e-2, rtol=2e-2), \
        float(jnp.max(jnp.abs(hidden - ref_hid)))

    print("KERNEL_OK")
</pallas_src>

<mosaic_0001>
module attributes {stable_mosaic.version = 11 : i64} {
  func.func @kernel(%arg0: i32, %arg1: i32, %arg2: memref<8x2x384xf32, #tpu.memory_space<vmem>>, %arg3: memref<128x384xf32, #tpu.memory_space<vmem>>, %arg4: memref<1x128xf32, #tpu.memory_space<vmem>>, %arg5: memref<2x8x128xf32, #tpu.memory_space<vmem>>, %arg6: memref<2x128xf32, #tpu.memory_space<vmem>>, %arg7: memref<2x8x128xf32, #tpu.memory_space<vmem>>, %arg8: memref<2x128xf32, #tpu.memory_space<vmem>>) attributes {dimension_semantics = [#tpu.dimension_semantics<parallel>, #tpu.dimension_semantics<arbitrary>], iteration_bounds = array<i64: 1, 1>, scalar_prefetch = 0 : i64, scratch_operands = 2 : i64, tpu.core_type = #tpu.core_type<tc>, window_params = [{transform_indices = @transform_0, window_bounds = array<i64: 8, 2, 384>}, {pipeline_mode = #tpu.pipeline_mode<synchronous>, transform_indices = @transform_1, window_bounds = array<i64: 128, 384>}, {pipeline_mode = #tpu.pipeline_mode<synchronous>, transform_indices = @transform_2, window_bounds = array<i64: 1, 128>}, {transform_indices = @transform_3, window_bounds = array<i64: 2, 8, 128>}, {transform_indices = @transform_4, window_bounds = array<i64: 2, 128>}]} {
    %c0_i32 = arith.constant 0 : i32
    %0 = arith.cmpi eq, %arg1, %c0_i32 : i32
    %1 = arith.extui %0 : i1 to i32
    %c0_i32_0 = arith.constant 0 : i32
    %2 = arith.cmpi ne, %1, %c0_i32_0 : i32
    scf.if %2 {
      %cst_83 = arith.constant 0.000000e+00 : f32
      %282 = vector.broadcast %cst_83 : f32 to vector<2x128xf32>
      %c0_84 = arith.constant 0 : index
      %c0_85 = arith.constant 0 : index
      %283 = vector.load %arg8[%c0_84, %c0_85] : memref<2x128xf32, #tpu.memory_space<vmem>>, vector<2x128xf32>
      tpu.vector_store %arg8[%c0_84, %c0_85], %282 {strides = array<i32>} : memref<2x128xf32, #tpu.memory_space<vmem>>, vector<2x128xf32>,
    } else {
    }
    %c0 = arith.constant 0 : index
    %c0_1 = arith.constant 0 : index
    %3 = vector.load %arg3[%c0, %c0_1] : memref<128x384xf32, #tpu.memory_space<vmem>>, vector<128x256xf32>
    %c0_2 = arith.constant 0 : index
    %c256 = arith.constant 256 : index
    %4 = vector.load %arg3[%c0_2, %c256] : memref<128x384xf32, #tpu.memory_space<vmem>>, vector<128x128xf32>
    %c0_3 = arith.constant 0 : index
    %c0_4 = arith.constant 0 : index
    %5 = vector.load %arg4[%c0_3, %c0_4] : memref<1x128xf32, #tpu.memory_space<vmem>>, vector<1x128xf32>
    %6 = vector.shape_cast %5 : vector<1x128xf32> to vector<1x128xf32>
    %7 = vector.broadcast %6 : vector<1x128xf32> to vector<2x128xf32>
    %c0_5 = arith.constant 0 : index
    %c0_6 = arith.constant 0 : index
    %8 = vector.load %arg8[%c0_5, %c0_6] : memref<2x128xf32, #tpu.memory_space<vmem>>, vector<2x128xf32>
    %c0_i32_7 = arith.constant 0 : i32
    %c8_i32 = arith.constant 8 : i32
    %9 = arith.muli %c0_i32_7, %c8_i32 : i32
    %10 = tpu.assume_multiple %9, 8 : i32
    %c0_i32_8 = arith.constant 0 : i32
    %11 = arith.addi %10, %c0_i32_8 : i32
    %12 = arith.index_cast %11 : i32 to index
    %c0_9 = arith.constant 0 : index
    %c0_10 = arith.constant 0 : index
    %13 = vector.load %arg2[%12, %c0_9, %c0_10] : memref<8x2x384xf32, #tpu.memory_space<vmem>>, vector<1x2x384xf32>
    %14 = vector.shape_cast %13 : vector<1x2x384xf32> to vector<2x384xf32>
    %cst = arith.constant dense<0.000000e+00> : vector<2x256xf32>
    %15 = tpu.matmul %8, %3, %cst {dimension_numbers = #tpu.dot_dimension_numbers<[1], [0], [0], [1], [0, 0, 1, 1], [], []>} : vector<2x128xf32>, vector<128x256xf32>, vector<2x256xf32> -> vector<2x256xf32>
    %cst_11 = arith.constant dense<0.000000e+00> : vector<2x128xf32>
    %16 = tpu.matmul %8, %4, %cst_11 {dimension_numbers = #tpu.dot_dimension_numbers<[1], [0], [0], [1], [0, 0, 1, 1], [], []>} : vector<2x128xf32>, vector<128x128xf32>, vector<2x128xf32> -> vector<2x128xf32>
    %17 = vector.extract_strided_slice %14 {offsets = [0, 0], sizes = [2, 128], strides = [1, 1]} : vector<2x384xf32> to vector<2x128xf32>
    %18 = vector.extract_strided_slice %15 {offsets = [0, 0], sizes = [2, 128], strides = [1, 1]} : vector<2x256xf32> to vector<2x128xf32>
    %19 = arith.addf %17, %18 : vector<2x128xf32>
    %20 = arith.negf %19 : vector<2x128xf32>
    %21 = math.exp %20 : vector<2x128xf32>
    %cst_12 = arith.constant 1.000000e+00 : f32
    %22 = vector.broadcast %cst_12 : f32 to vector<2x128xf32>
    %23 = arith.addf %22, %21 : vector<2x128xf32>
    %24 = arith.divf %22, %23 : vector<2x128xf32>
    %25 = vector.extract_strided_slice %14 {offsets = [0, 128], sizes = [2, 128], strides = [1, 1]} : vector<2x384xf32> to vector<2x128xf32>
    %26 = vector.extract_strided_slice %15 {offsets = [0, 128], sizes = [2, 128], strides = [1, 1]} : vector<2x256xf32> to vector<2x128xf32>
    %27 = arith.addf %25, %26 : vector<2x128xf32>
    %28 = arith.negf %27 : vector<2x128xf32>
    %29 = math.exp %28 : vector<2x128xf32>
    %cst_13 = arith.constant 1.000000e+00 : f32
    %30 = vector.broadcast %cst_13 : f32 to vector<2x128xf32>
    %31 = arith.addf %30, %29 : vector<2x128xf32>
    %32 = arith.divf %30, %31 : vector<2x128xf32>
    %33 = vector.extract_strided_slice %14 {offsets = [0, 256], sizes = [2, 128], strides = [1, 1]} : vector<2x384xf32> to vector<2x128xf32>
    %34 = arith.addf %16, %7 : vector<2x128xf32>
    %35 = arith.mulf %24, %34 : vector<2x128xf32>
    %36 = arith.addf %33, %35 : vector<2x128xf32>
    %37 = math.tanh %36 : vector<2x128xf32>
    %38 = arith.subf %8, %37 : vector<2x128xf32>
    %39 = arith.mulf %32, %38 : vector<2x128xf32>
    %40 = arith.addf %37, %39 : vector<2x128xf32>
    %c0_14 = arith.constant 0 : index
    %c0_15 = arith.constant 0 : index
    %c0_16 = arith.constant 0 : index
    %41 = vector.load %arg7[%c0_14, %c0_15, %c0_16] : memref<2x8x128xf32, #tpu.memory_space<vmem>>, vector<2x1x128xf32>
    %42 = vector.shape_cast %41 : vector<2x1x128xf32> to vector<2x128xf32>
    %43 = vector.shape_cast %40 : vector<2x128xf32> to vector<2x1x128xf32>
    tpu.vector_store %arg7[%c0_14, %c0_15, %c0_16], %43 {strides = array<i32>} : memref<2x8x128xf32, #tpu.memory_space<vmem>>, vector<2x1x128xf32>,
    %c1_i32 = arith.constant 1 : i32
    %44 = arith.addi %10, %c1_i32 : i32
    %45 = arith.index_cast %44 : i32 to index
    %c0_17 = arith.constant 0 : index
    %c0_18 = arith.constant 0 : index
    %46 = vector.load %arg2[%45, %c0_17, %c0_18] : memref<8x2x384xf32, #tpu.memory_space<vmem>>, vector<1x2x384xf32>
    %47 = vector.shape_cast %46 : vector<1x2x384xf32> to vector<2x384xf32>
    %cst_19 = arith.constant dense<0.000000e+00> : vector<2x256xf32>
    %48 = tpu.matmul %40, %3, %cst_19 {dimension_numbers = #tpu.dot_dimension_numbers<[1], [0], [0], [1], [0, 0, 1, 1], [], []>} : vector<2x128xf32>, vector<128x256xf32>, vector<2x256xf32> -> vector<2x256xf32>
    %cst_20 = arith.constant dense<0.000000e+00> : vector<2x128xf32>
    %49 = tpu.matmul %40, %4, %cst_20 {dimension_numbers = #tpu.dot_dimension_numbers<[1], [0], [0], [1], [0, 0, 1, 1], [], []>} : vector<2x128xf32>, vector<128x128xf32>, vector<2x128xf32> -> vector<2x128xf32>
    %50 = vector.extract_strided_slice %47 {offsets = [0, 0], sizes = [2, 128], strides = [1, 1]} : vector<2x384xf32> to vector<2x128xf32>
    %51 = vector.extract_strided_slice %48 {offsets = [0, 0], sizes = [2, 128], strides = [1, 1]} : vector<2x256xf32> to vector<2x128xf32>
    %52 = arith.addf %50, %51 : vector<2x128xf32>
    %53 = arith.negf %52 : vector<2x128xf32>
    %54 = math.exp %53 : vector<2x128xf32>
    %cst_21 = arith.constant 1.000000e+00 : f32
    %55 = vector.broadcast %cst_21 : f32 to vector<2x128xf32>
    %56 = arith.addf %55, %54 : vector<2x128xf32>
    %57 = arith.divf %55, %56 : vector<2x128xf32>
    %58 = vector.extract_strided_slice %47 {offsets = [0, 128], sizes = [2, 128], strides = [1, 1]} : vector<2x384xf32> to vector<2x128xf32>
    %59 = vector.extract_strided_slice %48 {offsets = [0, 128], sizes = [2, 128], strides = [1, 1]} : vector<2x256xf32> to vector<2x128xf32>
    %60 = arith.addf %58, %59 : vector<2x128xf32>
    %61 = arith.negf %60 : vector<2x128xf32>
    %62 = math.exp %61 : vector<2x128xf32>
    %cst_22 = arith.constant 1.000000e+00 : f32
    %63 = vector.broadcast %cst_22 : f32 to vector<2x128xf32>
    %64 = arith.addf %63, %62 : vector<2x128xf32>
    %65 = arith.divf %63, %64 : vector<2x128xf32>
    %66 = vector.extract_strided_slice %47 {offsets = [0, 256], sizes = [2, 128], strides = [1, 1]} : vector<2x384xf32> to vector<2x128xf32>
    %67 = arith.addf %49, %7 : vector<2x128xf32>
    %68 = arith.mulf %57, %67 : vector<2x128xf32>
    %69 = arith.addf %66, %68 : vector<2x128xf32>
    %70 = math.tanh %69 : vector<2x128xf32>
    %71 = arith.subf %40, %70 : vector<2x128xf32>
    %72 = arith.mulf %65, %71 : vector<2x128xf32>
    %73 = arith.addf %70, %72 : vector<2x128xf32>
    %c0_23 = arith.constant 0 : index
    %c1 = arith.constant 1 : index
    %c0_24 = arith.constant 0 : index
    %74 = vector.load %arg7[%c0_23, %c1, %c0_24] : memref<2x8x128xf32, #tpu.memory_space<vmem>>, vector<2x1x128xf32>
    %75 = vector.shape_cast %74 : vector<2x1x128xf32> to vector<2x128xf32>
    %76 = vector.shape_cast %73 : vector<2x128xf32> to vector<2x1x128xf32>
    tpu.vector_store %arg7[%c0_23, %c1, %c0_24], %76 {strides = array<i32>} : memref<2x8x128xf32, #tpu.memory_space<vmem>>, vector<2x1x128xf32>,
    %c2_i32 = arith.constant 2 : i32
    %77 = arith.addi %10, %c2_i32 : i32
    %78 = arith.index_cast %77 : i32 to index
    %c0_25 = arith.constant 0 : index
    %c0_26 = arith.constant 0 : index
    %79 = vector.load %arg2[%78, %c0_25, %c0_26] : memref<8x2x384xf32, #tpu.memory_space<vmem>>, vector<1x2x384xf32>
    %80 = vector.shape_cast %79 : vector<1x2x384xf32> to vector<2x384xf32>
    %cst_27 = arith.constant dense<0.000000e+00> : vector<2x256xf32>
    %81 = tpu.matmul %73, %3, %cst_27 {dimension_numbers = #tpu.dot_dimension_numbers<[1], [0], [0], [1], [0, 0, 1, 1], [], []>} : vector<2x128xf32>, vector<128x256xf32>, vector<2x256xf32> -> vector<2x256xf32>
    %cst_28 = arith.constant dense<0.000000e+00> : vector<2x128xf32>
    %82 = tpu.matmul %73, %4, %cst_28 {dimension_numbers = #tpu.dot_dimension_numbers<[1], [0], [0], [1], [0, 0, 1, 1], [], []>} : vector<2x128xf32>, vector<128x128xf32>, vector<2x128xf32> -> vector<2x128xf32>
    %83 = vector.extract_strided_slice %80 {offsets = [0, 0], sizes = [2, 128], strides = [1, 1]} : vector<2x384xf32> to vector<2x128xf32>
    %84 = vector.extract_strided_slice %81 {offsets = [0, 0], sizes = [2, 128], strides = [1, 1]} : vector<2x256xf32> to vector<2x128xf32>
    %85 = arith.addf %83, %84 : vector<2x128xf32>
    %86 = arith.negf %85 : vector<2x128xf32>
    %87 = math.exp %86 : vector<2x128xf32>
    %cst_29 = arith.constant 1.000000e+00 : f32
    %88 = vector.broadcast %cst_29 : f32 to vector<2x128xf32>
    %89 = arith.addf %88, %87 : vector<2x128xf32>
    %90 = arith.divf %88, %89 : vector<2x128xf32>
    %91 = vector.extract_strided_slice %80 {offsets = [0, 128], sizes = [2, 128], strides = [1, 1]} : vector<2x384xf32> to vector<2x128xf32>
    %92 = vector.extract_strided_slice %81 {offsets = [0, 128], sizes = [2, 128], strides = [1, 1]} : vector<2x256xf32> to vector<2x128xf32>
    %93 = arith.addf %91, %92 : vector<2x128xf32>
    %94 = arith.negf %93 : vector<2x128xf32>
    %95 = math.exp %94 : vector<2x128xf32>
    %cst_30 = arith.constant 1.000000e+00 : f32
    %96 = vector.broadcast %cst_30 : f32 to vector<2x128xf32>
    %97 = arith.addf %96, %95 : vector<2x128xf32>
    %98 = arith.divf %96, %97 : vector<2x128xf32>
    %99 = vector.extract_strided_slice %80 {offsets = [0, 256], sizes = [2, 128], strides = [1, 1]} : vector<2x384xf32> to vector<2x128xf32>
    %100 = arith.addf %82, %7 : vector<2x128xf32>
    %101 = arith.mulf %90, %100 : vector<2x128xf32>
    %102 = arith.addf %99, %101 : vector<2x128xf32>
    %103 = math.tanh %102 : vector<2x128xf32>
    %104 = arith.subf %73, %103 : vector<2x128xf32>
    %105 = arith.mulf %98, %104 : vector<2x128xf32>
    %106 = arith.addf %103, %105 : vector<2x128xf32>
    %c0_31 = arith.constant 0 : index
    %c2 = arith.constant 2 : index
    %c0_32 = arith.constant 0 : index
    %107 = vector.load %arg7[%c0_31, %c2, %c0_32] : memref<2x8x128xf32, #tpu.memory_space<vmem>>, vector<2x1x128xf32>
    %108 = vector.shape_cast %107 : vector<2x1x128xf32> to vector<2x128xf32>
    %109 = vector.shape_cast %106 : vector<2x128xf32> to vector<2x1x128xf32>
    tpu.vector_store %arg7[%c0_31, %c2, %c0_32], %109 {strides = array<i32>} : memref<2x8x128xf32, #tpu.memory_space<vmem>>, vector<2x1x128xf32>,
    %c3_i32 = arith.constant 3 : i32
    %110 = arith.addi %10, %c3_i32 : i32
    %111 = arith.index_cast %110 : i32 to index
    %c0_33 = arith.constant 0 : index
    %c0_34 = arith.constant 0 : index
    %112 = vector.load %arg2[%111, %c0_33, %c0_34] : memref<8x2x384xf32, #tpu.memory_space<vmem>>, vector<1x2x384xf32>
    %113 = vector.shape_cast %112 : vector<1x2x384xf32> to vector<2x384xf32>
    %cst_35 = arith.constant dense<0.000000e+00> : vector<2x256xf32>
    %114 = tpu.matmul %106, %3, %cst_35 {dimension_numbers = #tpu.dot_dimension_numbers<[1], [0], [0], [1], [0, 0, 1, 1], [], []>} : vector<2x128xf32>, vector<128x256xf32>, vector<2x256xf32> -> vector<2x256xf32>
    %cst_36 = arith.constant dense<0.000000e+00> : vector<2x128xf32>
    %115 = tpu.matmul %106, %4, %cst_36 {dimension_numbers = #tpu.dot_dimension_numbers<[1], [0], [0], [1], [0, 0, 1, 1], [], []>} : vector<2x128xf32>, vector<128x128xf32>, vector<2x128xf32> -> vector<2x128xf32>
    %116 = vector.extract_strided_slice %113 {offsets = [0, 0], sizes = [2, 128], strides = [1, 1]} : vector<2x384xf32> to vector<2x128xf32>
    %117 = vector.extract_strided_slice %114 {offsets = [0, 0], sizes = [2, 128], strides = [1, 1]} : vector<2x256xf32> to vector<2x128xf32>
    %118 = arith.addf %116, %117 : vector<2x128xf32>
    %119 = arith.negf %118 : vector<2x128xf32>
    %120 = math.exp %119 : vector<2x128xf32>
    %cst_37 = arith.constant 1.000000e+00 : f32
    %121 = vector.broadcast %cst_37 : f32 to vector<2x128xf32>
    %122 = arith.addf %121, %120 : vector<2x128xf32>
    %123 = arith.divf %121, %122 : vector<2x128xf32>
    %124 = vector.extract_strided_slice %113 {offsets = [0, 128], sizes = [2, 128], strides = [1, 1]} : vector<2x384xf32> to vector<2x128xf32>
    %125 = vector.extract_strided_slice %114 {offsets = [0, 128], sizes = [2, 128], strides = [1, 1]} : vector<2x256xf32> to vector<2x128xf32>
    %126 = arith.addf %124, %125 : vector<2x128xf32>
    %127 = arith.negf %126 : vector<2x128xf32>
    %128 = math.exp %127 : vector<2x128xf32>
    %cst_38 = arith.constant 1.000000e+00 : f32
    %129 = vector.broadcast %cst_38 : f32 to vector<2x128xf32>
    %130 = arith.addf %129, %128 : vector<2x128xf32>
    %131 = arith.divf %129, %130 : vector<2x128xf32>
    %132 = vector.extract_strided_slice %113 {offsets = [0, 256], sizes = [2, 128], strides = [1, 1]} : vector<2x384xf32> to vector<2x128xf32>
    %133 = arith.addf %115, %7 : vector<2x128xf32>
    %134 = arith.mulf %123, %133 : vector<2x128xf32>
    %135 = arith.addf %132, %134 : vector<2x128xf32>
    %136 = math.tanh %135 : vector<2x128xf32>
    %137 = arith.subf %106, %136 : vector<2x128xf32>
    %138 = arith.mulf %131, %137 : vector<2x128xf32>
    %139 = arith.addf %136, %138 : vector<2x128xf32>
    %c0_39 = arith.constant 0 : index
    %c3 = arith.constant 3 : index
    %c0_40 = arith.constant 0 : index
    %140 = vector.load %arg7[%c0_39, %c3, %c0_40] : memref<2x8x128xf32, #tpu.memory_space<vmem>>, vector<2x1x128xf32>
    %141 = vector.shape_cast %140 : vector<2x1x128xf32> to vector<2x128xf32>
    %142 = vector.shape_cast %139 : vector<2x128xf32> to vector<2x1x128xf32>
    tpu.vector_store %arg7[%c0_39, %c3, %c0_40], %142 {strides = array<i32>} : memref<2x8x128xf32, #tpu.memory_space<vmem>>, vector<2x1x128xf32>,
    %c4_i32 = arith.constant 4 : i32
    %143 = arith.addi %10, %c4_i32 : i32
    %144 = arith.index_cast %143 : i32 to index
    %c0_41 = arith.constant 0 : index
    %c0_42 = arith.constant 0 : index
    %145 = vector.load %arg2[%144, %c0_41, %c0_42] : memref<8x2x384xf32, #tpu.memory_space<vmem>>, vector<1x2x384xf32>
    %146 = vector.shape_cast %145 : vector<1x2x384xf32> to vector<2x384xf32>
    %cst_43 = arith.constant dense<0.000000e+00> : vector<2x256xf32>
    %147 = tpu.matmul %139, %3, %cst_43 {dimension_numbers = #tpu.dot_dimension_numbers<[1], [0], [0], [1], [0, 0, 1, 1], [], []>} : vector<2x128xf32>, vector<128x256xf32>, vector<2x256xf32> -> vector<2x256xf32>
    %cst_44 = arith.constant dense<0.000000e+00> : vector<2x128xf32>
    %148 = tpu.matmul %139, %4, %cst_44 {dimension_numbers = #tpu.dot_dimension_numbers<[1], [0], [0], [1], [0, 0, 1, 1], [], []>} : vector<2x128xf32>, vector<128x128xf32>, vector<2x128xf32> -> vector<2x128xf32>
    %149 = vector.extract_strided_slice %146 {offsets = [0, 0], sizes = [2, 128], strides = [1, 1]} : vector<2x384xf32> to vector<2x128xf32>
    %150 = vector.extract_strided_slice %147 {offsets = [0, 0], sizes = [2, 128], strides = [1, 1]} : vector<2x256xf32> to vector<2x128xf32>
    %151 = arith.addf %149, %150 : vector<2x128xf32>
    %152 = arith.negf %151 : vector<2x128xf32>
    %153 = math.exp %152 : vector<2x128xf32>
    %cst_45 = arith.constant 1.000000e+00 : f32
    %154 = vector.broadcast %cst_45 : f32 to vector<2x128xf32>
    %155 = arith.addf %154, %153 : vector<2x128xf32>
    %156 = arith.divf %154, %155 : vector<2x128xf32>
    %157 = vector.extract_strided_slice %146 {offsets = [0, 128], sizes = [2, 128], strides = [1, 1]} : vector<2x384xf32> to vector<2x128xf32>
    %158 = vector.extract_strided_slice %147 {offsets = [0, 128], sizes = [2, 128], strides = [1, 1]} : vector<2x256xf32> to vector<2x128xf32>
    %159 = arith.addf %157, %158 : vector<2x128xf32>
    %160 = arith.negf %159 : vector<2x128xf32>
    %161 = math.exp %160 : vector<2x128xf32>
    %cst_46 = arith.constant 1.000000e+00 : f32
    %162 = vector.broadcast %cst_46 : f32 to vector<2x128xf32>
    %163 = arith.addf %162, %161 : vector<2x128xf32>
    %164 = arith.divf %162, %163 : vector<2x128xf32>
    %165 = vector.extract_strided_slice %146 {offsets = [0, 256], sizes = [2, 128], strides = [1, 1]} : vector<2x384xf32> to vector<2x128xf32>
    %166 = arith.addf %148, %7 : vector<2x128xf32>
    %167 = arith.mulf %156, %166 : vector<2x128xf32>
    %168 = arith.addf %165, %167 : vector<2x128xf32>
    %169 = math.tanh %168 : vector<2x128xf32>
    %170 = arith.subf %139, %169 : vector<2x128xf32>
    %171 = arith.mulf %164, %170 : vector<2x128xf32>
    %172 = arith.addf %169, %171 : vector<2x128xf32>
    %c0_47 = arith.constant 0 : index
    %c4 = arith.constant 4 : index
    %c0_48 = arith.constant 0 : index
    %173 = vector.load %arg7[%c0_47, %c4, %c0_48] : memref<2x8x128xf32, #tpu.memory_space<vmem>>, vector<2x1x128xf32>
    %174 = vector.shape_cast %173 : vector<2x1x128xf32> to vector<2x128xf32>
    %175 = vector.shape_cast %172 : vector<2x128xf32> to vector<2x1x128xf32>
    tpu.vector_store %arg7[%c0_47, %c4, %c0_48], %175 {strides = array<i32>} : memref<2x8x128xf32, #tpu.memory_space<vmem>>, vector<2x1x128xf32>,
    %c5_i32 = arith.constant 5 : i32
    %176 = arith.addi %10, %c5_i32 : i32
    %177 = arith.index_cast %176 : i32 to index
    %c0_49 = arith.constant 0 : index
    %c0_50 = arith.constant 0 : index
    %178 = vector.load %arg2[%177, %c0_49, %c0_50] : memref<8x2x384xf32, #tpu.memory_space<vmem>>, vector<1x2x384xf32>
    %179 = vector.shape_cast %178 : vector<1x2x384xf32> to vector<2x384xf32>
    %cst_51 = arith.constant dense<0.000000e+00> : vector<2x256xf32>
    %180 = tpu.matmul %172, %3, %cst_51 {dimension_numbers = #tpu.dot_dimension_numbers<[1], [0], [0], [1], [0, 0, 1, 1], [], []>} : vector<2x128xf32>, vector<128x256xf32>, vector<2x256xf32> -> vector<2x256xf32>
    %cst_52 = arith.constant dense<0.000000e+00> : vector<2x128xf32>
    %181 = tpu.matmul %172, %4, %cst_52 {dimension_numbers = #tpu.dot_dimension_numbers<[1], [0], [0], [1], [0, 0, 1, 1], [], []>} : vector<2x128xf32>, vector<128x128xf32>, vector<2x128xf32> -> vector<2x128xf32>
    %182 = vector.extract_strided_slice %179 {offsets = [0, 0], sizes = [2, 128], strides = [1, 1]} : vector<2x384xf32> to vector<2x128xf32>
    %183 = vector.extract_strided_slice %180 {offsets = [0, 0], sizes = [2, 128], strides = [1, 1]} : vector<2x256xf32> to vector<2x128xf32>
    %184 = arith.addf %182, %183 : vector<2x128xf32>
    %185 = arith.negf %184 : vector<2x128xf32>
    %186 = math.exp %185 : vector<2x128xf32>
    %cst_53 = arith.constant 1.000000e+00 : f32
    %187 = vector.broadcast %cst_53 : f32 to vector<2x128xf32>
    %188 = arith.addf %187, %186 : vector<2x128xf32>
    %189 = arith.divf %187, %188 : vector<2x128xf32>
    %190 = vector.extract_strided_slice %179 {offsets = [0, 128], sizes = [2, 128], strides = [1, 1]} : vector<2x384xf32> to vector<2x128xf32>
    %191 = vector.extract_strided_slice %180 {offsets = [0, 128], sizes = [2, 128], strides = [1, 1]} : vector<2x256xf32> to vector<2x128xf32>
    %192 = arith.addf %190, %191 : vector<2x128xf32>
    %193 = arith.negf %192 : vector<2x128xf32>
    %194 = math.exp %193 : vector<2x128xf32>
    %cst_54 = arith.constant 1.000000e+00 : f32
    %195 = vector.broadcast %cst_54 : f32 to vector<2x128xf32>
    %196 = arith.addf %195, %194 : vector<2x128xf32>
    %197 = arith.divf %195, %196 : vector<2x128xf32>
    %198 = vector.extract_strided_slice %179 {offsets = [0, 256], sizes = [2, 128], strides = [1, 1]} : vector<2x384xf32> to vector<2x128xf32>
    %199 = arith.addf %181, %7 : vector<2x128xf32>
    %200 = arith.mulf %189, %199 : vector<2x128xf32>
    %201 = arith.addf %198, %200 : vector<2x128xf32>
    %202 = math.tanh %201 : vector<2x128xf32>
    %203 = arith.subf %172, %202 : vector<2x128xf32>
    %204 = arith.mulf %197, %203 : vector<2x128xf32>
    %205 = arith.addf %202, %204 : vector<2x128xf32>
    %c0_55 = arith.constant 0 : index
    %c5 = arith.constant 5 : index
    %c0_56 = arith.constant 0 : index
    %206 = vector.load %arg7[%c0_55, %c5, %c0_56] : memref<2x8x128xf32, #tpu.memory_space<vmem>>, vector<2x1x128xf32>
    %207 = vector.shape_cast %206 : vector<2x1x128xf32> to vector<2x128xf32>
    %208 = vector.shape_cast %205 : vector<2x128xf32> to vector<2x1x128xf32>
    tpu.vector_store %arg7[%c0_55, %c5, %c0_56], %208 {strides = array<i32>} : memref<2x8x128xf32, #tpu.memory_space<vmem>>, vector<2x1x128xf32>,
    %c6_i32 = arith.constant 6 : i32
    %209 = arith.addi %10, %c6_i32 : i32
    %210 = arith.index_cast %209 : i32 to index
    %c0_57 = arith.constant 0 : index
    %c0_58 = arith.constant 0 : index
    %211 = vector.load %arg2[%210, %c0_57, %c0_58] : memref<8x2x384xf32, #tpu.memory_space<vmem>>, vector<1x2x384xf32>
    %212 = vector.shape_cast %211 : vector<1x2x384xf32> to vector<2x384xf32>
    %cst_59 = arith.constant dense<0.000000e+00> : vector<2x256xf32>
    %213 = tpu.matmul %205, %3, %cst_59 {dimension_numbers = #tpu.dot_dimension_numbers<[1], [0], [0], [1], [0, 0, 1, 1], [], []>} : vector<2x128xf32>, vector<128x256xf32>, vector<2x256xf32> -> vector<2x256xf32>
    %cst_60 = arith.constant dense<0.000000e+00> : vector<2x128xf32>
    %214 = tpu.matmul %205, %4, %cst_60 {dimension_numbers = #tpu.dot_dimension_numbers<[1], [0], [0], [1], [0, 0, 1, 1], [], []>} : vector<2x128xf32>, vector<128x128xf32>, vector<2x128xf32> -> vector<2x128xf32>
    %215 = vector.extract_strided_slice %212 {offsets = [0, 0], sizes = [2, 128], strides = [1, 1]} : vector<2x384xf32> to vector<2x128xf32>
    %216 = vector.extract_strided_slice %213 {offsets = [0, 0], sizes = [2, 128], strides = [1, 1]} : vector<2x256xf32> to vector<2x128xf32>
    %217 = arith.addf %215, %216 : vector<2x128xf32>
    %218 = arith.negf %217 : vector<2x128xf32>
    %219 = math.exp %218 : vector<2x128xf32>
    %cst_61 = arith.constant 1.000000e+00 : f32
    %220 = vector.broadcast %cst_61 : f32 to vector<2x128xf32>
    %221 = arith.addf %220, %219 : vector<2x128xf32>
    %222 = arith.divf %220, %221 : vector<2x128xf32>
    %223 = vector.extract_strided_slice %212 {offsets = [0, 128], sizes = [2, 128], strides = [1, 1]} : vector<2x384xf32> to vector<2x128xf32>
    %224 = vector.extract_strided_slice %213 {offsets = [0, 128], sizes = [2, 128], strides = [1, 1]} : vector<2x256xf32> to vector<2x128xf32>
    %225 = arith.addf %223, %224 : vector<2x128xf32>
    %226 = arith.negf %225 : vector<2x128xf32>
    %227 = math.exp %226 : vector<2x128xf32>
    %cst_62 = arith.constant 1.000000e+00 : f32
    %228 = vector.broadcast %cst_62 : f32 to vector<2x128xf32>
    %229 = arith.addf %228, %227 : vector<2x128xf32>
    %230 = arith.divf %228, %229 : vector<2x128xf32>
    %231 = vector.extract_strided_slice %212 {offsets = [0, 256], sizes = [2, 128], strides = [1, 1]} : vector<2x384xf32> to vector<2x128xf32>
    %232 = arith.addf %214, %7 : vector<2x128xf32>
    %233 = arith.mulf %222, %232 : vector<2x128xf32>
    %234 = arith.addf %231, %233 : vector<2x128xf32>
    %235 = math.tanh %234 : vector<2x128xf32>
    %236 = arith.subf %205, %235 : vector<2x128xf32>
    %237 = arith.mulf %230, %236 : vector<2x128xf32>
    %238 = arith.addf %235, %237 : vector<2x128xf32>
    %c0_63 = arith.constant 0 : index
    %c6 = arith.constant 6 : index
    %c0_64 = arith.constant 0 : index
    %239 = vector.load %arg7[%c0_63, %c6, %c0_64] : memref<2x8x128xf32, #tpu.memory_space<vmem>>, vector<2x1x128xf32>
    %240 = vector.shape_cast %239 : vector<2x1x128xf32> to vector<2x128xf32>
    %241 = vector.shape_cast %238 : vector<2x128xf32> to vector<2x1x128xf32>
    tpu.vector_store %arg7[%c0_63, %c6, %c0_64], %241 {strides = array<i32>} : memref<2x8x128xf32, #tpu.memory_space<vmem>>, vector<2x1x128xf32>,
    %c7_i32 = arith.constant 7 : i32
    %242 = arith.addi %10, %c7_i32 : i32
    %243 = arith.index_cast %242 : i32 to index
    %c0_65 = arith.constant 0 : index
    %c0_66 = arith.constant 0 : index
    %244 = vector.load %arg2[%243, %c0_65, %c0_66] : memref<8x2x384xf32, #tpu.memory_space<vmem>>, vector<1x2x384xf32>
    %245 = vector.shape_cast %244 : vector<1x2x384xf32> to vector<2x384xf32>
    %cst_67 = arith.constant dense<0.000000e+00> : vector<2x256xf32>
    %246 = tpu.matmul %238, %3, %cst_67 {dimension_numbers = #tpu.dot_dimension_numbers<[1], [0], [0], [1], [0, 0, 1, 1], [], []>} : vector<2x128xf32>, vector<128x256xf32>, vector<2x256xf32> -> vector<2x256xf32>
    %cst_68 = arith.constant dense<0.000000e+00> : vector<2x128xf32>
    %247 = tpu.matmul %238, %4, %cst_68 {dimension_numbers = #tpu.dot_dimension_numbers<[1], [0], [0], [1], [0, 0, 1, 1], [], []>} : vector<2x128xf32>, vector<128x128xf32>, vector<2x128xf32> -> vector<2x128xf32>
    %248 = vector.extract_strided_slice %245 {offsets = [0, 0], sizes = [2, 128], strides = [1, 1]} : vector<2x384xf32> to vector<2x128xf32>
    %249 = vector.extract_strided_slice %246 {offsets = [0, 0], sizes = [2, 128], strides = [1, 1]} : vector<2x256xf32> to vector<2x128xf32>
    %250 = arith.addf %248, %249 : vector<2x128xf32>
    %251 = arith.negf %250 : vector<2x128xf32>
    %252 = math.exp %251 : vector<2x128xf32>
    %cst_69 = arith.constant 1.000000e+00 : f32
    %253 = vector.broadcast %cst_69 : f32 to vector<2x128xf32>
    %254 = arith.addf %253, %252 : vector<2x128xf32>
    %255 = arith.divf %253, %254 : vector<2x128xf32>
    %256 = vector.extract_strided_slice %245 {offsets = [0, 128], sizes = [2, 128], strides = [1, 1]} : vector<2x384xf32> to vector<2x128xf32>
    %257 = vector.extract_strided_slice %246 {offsets = [0, 128], sizes = [2, 128], strides = [1, 1]} : vector<2x256xf32> to vector<2x128xf32>
    %258 = arith.addf %256, %257 : vector<2x128xf32>
    %259 = arith.negf %258 : vector<2x128xf32>
    %260 = math.exp %259 : vector<2x128xf32>
    %cst_70 = arith.constant 1.000000e+00 : f32
    %261 = vector.broadcast %cst_70 : f32 to vector<2x128xf32>
    %262 = arith.addf %261, %260 : vector<2x128xf32>
    %263 = arith.divf %261, %262 : vector<2x128xf32>
    %264 = vector.extract_strided_slice %245 {offsets = [0, 256], sizes = [2, 128], strides = [1, 1]} : vector<2x384xf32> to vector<2x128xf32>
    %265 = arith.addf %247, %7 : vector<2x128xf32>
    %266 = arith.mulf %255, %265 : vector<2x128xf32>
    %267 = arith.addf %264, %266 : vector<2x128xf32>
    %268 = math.tanh %267 : vector<2x128xf32>
    %269 = arith.subf %238, %268 : vector<2x128xf32>
    %270 = arith.mulf %263, %269 : vector<2x128xf32>
    %271 = arith.addf %268, %270 : vector<2x128xf32>
    %c0_71 = arith.constant 0 : index
    %c7 = arith.constant 7 : index
    %c0_72 = arith.constant 0 : index
    %272 = vector.load %arg7[%c0_71, %c7, %c0_72] : memref<2x8x128xf32, #tpu.memory_space<vmem>>, vector<2x1x128xf32>
    %273 = vector.shape_cast %272 : vector<2x1x128xf32> to vector<2x128xf32>
    %274 = vector.shape_cast %271 : vector<2x128xf32> to vector<2x1x128xf32>
    tpu.vector_store %arg7[%c0_71, %c7, %c0_72], %274 {strides = array<i32>} : memref<2x8x128xf32, #tpu.memory_space<vmem>>, vector<2x1x128xf32>,
    %c0_73 = arith.constant 0 : index
    %c0_74 = arith.constant 0 : index
    %c0_75 = arith.constant 0 : index
    %275 = vector.load %arg7[%c0_73, %c0_74, %c0_75] : memref<2x8x128xf32, #tpu.memory_space<vmem>>, vector<2x8x128xf32>
    %c0_76 = arith.constant 0 : index
    %276 = arith.index_cast %10 : i32 to index
    %c0_77 = arith.constant 0 : index
    %277 = vector.load %arg5[%c0_76, %276, %c0_77] : memref<2x8x128xf32, #tpu.memory_space<vmem>>, vector<2x8x128xf32>
    tpu.vector_store %arg5[%c0_76, %276, %c0_77], %275 {strides = array<i32>} : memref<2x8x128xf32, #tpu.memory_space<vmem>>, vector<2x8x128xf32>,
    %c1_i32_78 = arith.constant 1 : i32
    %c0_79 = arith.constant 0 : index
    %c0_80 = arith.constant 0 : index
    %278 = vector.load %arg8[%c0_79, %c0_80] : memref<2x128xf32, #tpu.memory_space<vmem>>, vector<2x128xf32>
    tpu.vector_store %arg8[%c0_79, %c0_80], %271 {strides = array<i32>} : memref<2x128xf32, #tpu.memory_space<vmem>>, vector<2x128xf32>,
    %c0_i32_81 = arith.constant 0 : i32
    %279 = arith.cmpi eq, %arg1, %c0_i32_81 : i32
    %280 = arith.extui %279 : i1 to i32
    %c0_i32_82 = arith.constant 0 : i32
    %281 = arith.cmpi ne, %280, %c0_i32_82 : i32
    scf.if %281 {
      %c0_83 = arith.constant 0 : index
      %c0_84 = arith.constant 0 : index
      %282 = vector.load %arg6[%c0_83, %c0_84] : memref<2x128xf32, #tpu.memory_space<vmem>>, vector<2x128xf32>
      tpu.vector_store %arg6[%c0_83, %c0_84], %271 {strides = array<i32>} : memref<2x128xf32, #tpu.memory_space<vmem>>, vector<2x128xf32>,
    } else {
    }
    return
  }
  func.func @transform_0(%arg0: i32, %arg1: i32) -> (i32, i32, i32) {
    %c0_i32 = arith.constant 0 : i32
    %c0_i32_0 = arith.constant 0 : i32
    return %arg1, %arg0, %c0_i32 : i32, i32, i32
  }
  func.func @transform_1(%arg0: i32, %arg1: i32) -> (i32, i32) {
    %c0_i32 = arith.constant 0 : i32
    %c0_i32_0 = arith.constant 0 : i32
    %c0_i32_1 = arith.constant 0 : i32
    return %c0_i32, %c0_i32_0 : i32, i32
  }
  func.func @transform_2(%arg0: i32, %arg1: i32) -> (i32, i32) {
    %c0_i32 = arith.constant 0 : i32
    %c0_i32_0 = arith.constant 0 : i32
    %c0_i32_1 = arith.constant 0 : i32
    return %c0_i32, %c0_i32_0 : i32, i32
  }
  func.func @transform_3(%arg0: i32, %arg1: i32) -> (i32, i32, i32) {
    %c0_i32 = arith.constant 0 : i32
    %c0_i32_0 = arith.constant 0 : i32
    return %arg0, %arg1, %c0_i32 : i32, i32, i32
  }
  func.func @transform_4(%arg0: i32, %arg1: i32) -> (i32, i32) {
    %c0_i32 = arith.constant 0 : i32
    %c0_i32_0 = arith.constant 0 : i32
    return %arg0, %c0_i32 : i32, i32
  }
}

</mosaic_0001>

<llo_original>
// kernel: encoder_rnn_forward.1
$region0: #{encoder_rnn_forward.1}
  #allocation0 [shape = 'u32[]', space=smem, size = 0x4, offset = 0x4, fixed_abs, tag = 'smem constant byte address 0x4 - core index']
  #allocation1 [shape = 'u32[72,128]{1,0:T(1,128)}', space=vmem, size = 0x9000, scoped, tag = 'internal scratch']
  #allocation2 [shape = 'f32[2,8,128]{2,1,0:T(8,128)}', space=vmem, size = 0x2000, scoped, tag = 'scratch operand']
  #allocation3 [shape = 'f32[2,128]{1,0:T(2,128)}', space=vmem, size = 0x400, scoped, tag = 'scratch operand']
  %s0 = inlined_call_operand.vmem [shape: f32[8,2,384], index: 0, kind: input, shape index: {}]
  %s1 = inlined_call_operand.vmem [shape: f32[128,384], index: 1, kind: input, shape index: {}]
  %s2 = inlined_call_operand.vmem [shape: f32[1,128], index: 2, kind: input, shape index: {}]
  %s3 = inlined_call_operand.hbm [shape: f32[2,8,128], index: 3, kind: output, shape index: {0}]
  %s4 = inlined_call_operand.hbm [shape: f32[2,128], index: 4, kind: output, shape index: {1}]
  %5 = xla_tuple %s3, %s4
  %s6 = sld [smem:[#allocation0]]
  $region38: #{encoder_rnn_forward.1} parent=0
    _
  %s8 = ssub.s32 1, %s6
  %s9 = scalar_select 0, %s8, %s6
  $region1: #{encoder_rnn_forward.1} parent=0
    #allocation4 [shape = 'u8[8192]{0}', space=vmem, size = 0x2000, scoped, tag = 'output window, operand 0, single buffered']
    #allocation5 [shape = 's32[1]{0}', space=sflag, size = 0x4, scoped, tag = 'scoped memory for encoder_rnn_forward.1']
    #allocation6 [shape = 'u8[1024]{0}', space=vmem, size = 0x400, scoped, tag = 'output window, operand 1, single buffered']
    #allocation7 [shape = 's32[1]{0}', space=sflag, size = 0x4, scoped, tag = 'scoped memory for encoder_rnn_forward.1']
    %10 = vsyncpa [#allocation5], 0
    %11 = vsyncpa [#allocation7], 0
    // Predicated region
    $region2: #{encoder_rnn_forward.1} parent=1 // pred_check
      _
    $region3: #{encoder_rnn_forward.1} parent=1 // pred_check_branch
      %13 = sbr.rel (0) target = $region5
    $region4: #{encoder_rnn_forward.1} parent=1 // pred_region
      _
    $region5: #{encoder_rnn_forward.1} parent=1 // pred_fallthru
      _
    // Predicated region
    $region6: #{encoder_rnn_forward.1} parent=1 // pred_check
      _
    $region7: #{encoder_rnn_forward.1} parent=1 // pred_check_branch
      %15 = sbr.rel (0) target = $region9
    $region8: #{encoder_rnn_forward.1} parent=1 // pred_region
      _
    $region9: #{encoder_rnn_forward.1} parent=1 // pred_fallthru
      _
    // Predicated region
    $region10: #{encoder_rnn_forward.1} parent=1 // pred_check
      _
    $region11: #{encoder_rnn_forward.1} parent=1 // pred_check_branch
      %17 = sbr.rel (0) target = $region13
    $region12: #{encoder_rnn_forward.1} parent=1 // pred_region
      _
    $region13: #{encoder_rnn_forward.1} parent=1 // pred_fallthru
      _
    %p18 = scmp.eq.s32.totalorder 0, 0
    // Predicated region
    $region14: #{encoder_rnn_forward.1} parent=1 // pred_check
      %p19 = pneg %p18
    $region15: #{encoder_rnn_forward.1} parent=1 // pred_check_branch
      %21 = sbr.rel (%p19) target = $region17
    $region16: #{encoder_rnn_forward.1} parent=1 // pred_region
      %22 = vst [vmem:[#allocation3] sm:$0x3] 0.0
    $region17: #{encoder_rnn_forward.1} parent=1 // pred_fallthru
      _
    %v23 = vld [vmem:[%s1] sm:$0xff]
    %v24 = vld [vmem:[%s1 + $0x8] sm:$0xff]
    %v25 = vld [vmem:[%s1 + $0x18] sm:$0xff]
    %v26 = vld [vmem:[%s1 + $0x20] sm:$0xff]
    %v27 = vld [vmem:[%s1 + $0x30] sm:$0xff]
    %v28 = vld [vmem:[%s1 + $0x38] sm:$0xff]
    %v29 = vld [vmem:[%s1 + $0x48] sm:$0xff]
    %v30 = vld [vmem:[%s1 + $0x50] sm:$0xff]
    %v31 = vld [vmem:[%s1 + $0x60] sm:$0xff]
    %v32 = vld [vmem:[%s1 + $0x68] sm:$0xff]
    %v33 = vld [vmem:[%s1 + $0x78] sm:$0xff]
    %v34 = vld [vmem:[%s1 + $0x80] sm:$0xff]
    %v35 = vld [vmem:[%s1 + $0x90] sm:$0xff]
    %v36 = vld [vmem:[%s1 + $0x98] sm:$0xff]
    %v37 = vld [vmem:[%s1 + $0xa8] sm:$0xff]
    %v38 = vld [vmem:[%s1 + $0xb0] sm:$0xff]
    %v39 = vld [vmem:[%s1 + $0xc0] sm:$0xff]
    %v40 = vld [vmem:[%s1 + $0xc8] sm:$0xff]
    %v41 = vld [vmem:[%s1 + $0xd8] sm:$0xff]
    %v42 = vld [vmem:[%s1 + $0xe0] sm:$0xff]
    %v43 = vld [vmem:[%s1 + $0xf0] sm:$0xff]
    %v44 = vld [vmem:[%s1 + $0xf8] sm:$0xff]
    %v45 = vld [vmem:[%s1 + $0x108] sm:$0xff]
    %v46 = vld [vmem:[%s1 + $0x110] sm:$0xff]
    %v47 = vld [vmem:[%s1 + $0x120] sm:$0xff]
    %v48 = vld [vmem:[%s1 + $0x128] sm:$0xff]
    %v49 = vld [vmem:[%s1 + $0x138] sm:$0xff]
    %v50 = vld [vmem:[%s1 + $0x140] sm:$0xff]
    %v51 = vld [vmem:[%s1 + $0x150] sm:$0xff]
    %v52 = vld [vmem:[%s1 + $0x158] sm:$0xff]
    %v53 = vld [vmem:[%s1 + $0x168] sm:$0xff]
    %v54 = vld [vmem:[%s1 + $0x170] sm:$0xff]
    %v55 = vld [vmem:[%s1 + $0x10] sm:$0xff]
    %v56 = vld [vmem:[%s1 + $0x28] sm:$0xff]
    %v57 = vld [vmem:[%s1 + $0x40] sm:$0xff]
    %v58 = vld [vmem:[%s1 + $0x58] sm:$0xff]
    %v59 = vld [vmem:[%s1 + $0x70] sm:$0xff]
    %v60 = vld [vmem:[%s1 + $0x88] sm:$0xff]
    %v61 = vld [vmem:[%s1 + $0xa0] sm:$0xff]
    %v62 = vld [vmem:[%s1 + $0xb8] sm:$0xff]
    %v63 = vld [vmem:[%s1 + $0xd0] sm:$0xff]
    %v64 = vld [vmem:[%s1 + $0xe8] sm:$0xff]
    %v65 = vld [vmem:[%s1 + $0x100] sm:$0xff]
    %v66 = vld [vmem:[%s1 + $0x118] sm:$0xff]
    %v67 = vld [vmem:[%s1 + $0x130] sm:$0xff]
    %v68 = vld [vmem:[%s1 + $0x148] sm:$0xff]
    %v69 = vld [vmem:[%s1 + $0x160] sm:$0xff]
    %v70 = vld [vmem:[%s1 + $0x178] sm:$0xff]
    %v71 = vld [vmem:[%s2] sm:$0x1]
    %v73 = vperm.slane %v71, 0
    %v75 = vld [vmem:[#allocation3] sm:$0x3]
    %s76 = smul.u32 0, 3
    %s77 = smul.addr %s76, 2
    %s78 = scalar_lea.vmem %s0, %s77
    %v79 = vld [vmem:[%s78] sm:$0x3f]
    %80 = vmatpush.msra.mxu0 %v53
    %81 = vmatpush.msra.mxu0 %v51
    %82 = vmatpush.msra.mxu0 %v49
    %83 = vmatpush.msra.mxu0 %v47
    %84 = vmatpush.msra.mxu0 %v45
    %85 = vmatpush.msra.mxu0 %v43
    %86 = vmatpush.msra.mxu0 %v41
    %87 = vmatpush.msra.mxu0 %v39
    %88 = vmatpush.msra.mxu0 %v37
    %89 = vmatpush.msra.mxu0 %v35
    %90 = vmatpush.msra.mxu0 %v33
    %91 = vmatpush.msra.mxu0 %v31
    %92 = vmatpush.msra.mxu0 %v29
    %93 = vmatpush.msra.mxu0 %v27
    %94 = vmatpush.msra.mxu0 %v25
    %95 = vmatpush.msra.mxu0 %v23
    %96 = vmatmul.f32.gmra.mxu0 %v75
    %v97 = vpop.f32.mrf.mxu0
    %v98 = vadd.f32 0.0, %v97
    %99 = vdwg.mxu0
    %100 = vmatpush.msra.mxu0 %v54
    %101 = vmatpush.msra.mxu0 %v52
    %102 = vmatpush.msra.mxu0 %v50
    %103 = vmatpush.msra.mxu0 %v48
    %104 = vmatpush.msra.mxu0 %v46
    %105 = vmatpush.msra.mxu0 %v44
    %106 = vmatpush.msra.mxu0 %v42
    %107 = vmatpush.msra.mxu0 %v40
    %108 = vmatpush.msra.mxu0 %v38
    %109 = vmatpush.msra.mxu0 %v36
    %110 = vmatpush.msra.mxu0 %v34
    %111 = vmatpush.msra.mxu0 %v32
    %112 = vmatpush.msra.mxu0 %v30
    %113 = vmatpush.msra.mxu0 %v28
    %114 = vmatpush.msra.mxu0 %v26
    %115 = vmatpush.msra.mxu0 %v24
    %116 = vmatmul.f32.gmra.mxu0 %v75
    %v117 = vpop.f32.mrf.mxu0
    %v118 = vadd.f32 0.0, %v117
    %119 = vdwg.mxu0
    %v120 = vadd.f32 %v79, %v98
    %v121 = vxor.u32 %v120, 2147483648
    %v122 = vmul.f32 %v121, 1.442695
    %v123 = vpow.pop %v122
    %v124 = vadd.f32 %v123, 1.0
    %v125 = vrcp.pop %v124
    %v126 = vmul.f32 %v124, %v125
    %v127 = vsub.f32 1.0, %v126
    %v128 = vmul.f32 %v125, %v127
    %v129 = vadd.f32 %v125, %v128
    %vm130 = vweird.f32 %v124
    %vm131 = vweird.f32 %v125
    %vm132 = vmor %vm130, %vm131
    %v133 = vsel %vm132, %v125, %v129
    %v134 = vand.u32 2147483647, %v124
    %vm135 = vcmp.eq.f32.partialorder %v134, 8.507059e+37
    %v136 = vand.u32 %v124, 2147483648
    %v137 = vor.u32 1.1754944e-38, %v136
    %v138 = vsel %vm135, %v137, %v133
    %v139 = vmul.f32 1.0, %v138
    %v141 = vrot.slane %v79, 2
    %v143 = vadd.f32 %v141, %v118
    %v144 = vxor.u32 %v143, 2147483648
    %v145 = vmul.f32 %v144, 1.442695
    %v146 = vpow.pop %v145
    %v147 = vadd.f32 %v146, 1.0
    %v148 = vrcp.pop %v147
    %v149 = vmul.f32 %v147, %v148
    %v150 = vsub.f32 1.0, %v149
    %v151 = vmul.f32 %v148, %v150
    %v152 = vadd.f32 %v148, %v151
    %vm153 = vweird.f32 %v147
    %vm154 = vweird.f32 %v148
    %vm155 = vmor %vm153, %vm154
    %v156 = vsel %vm155, %v148, %v152
    %v157 = vand.u32 2147483647, %v147
    %vm158 = vcmp.eq.f32.partialorder %v157, 8.507059e+37
    %v159 = vand.u32 %v147, 2147483648
    %v160 = vor.u32 1.1754944e-38, %v159
    %v161 = vsel %vm158, %v160, %v156
    %v162 = vmul.f32 1.0, %v161
    %163 = vmatpush.msra.mxu0 %v70
    %164 = vmatpush.msra.mxu0 %v69
    %165 = vmatpush.msra.mxu0 %v68
    %166 = vmatpush.msra.mxu0 %v67
    %167 = vmatpush.msra.mxu0 %v66
    %168 = vmatpush.msra.mxu0 %v65
    %169 = vmatpush.msra.mxu0 %v64
    %170 = vmatpush.msra.mxu0 %v63
    %171 = vmatpush.msra.mxu0 %v62
    %172 = vmatpush.msra.mxu0 %v61
    %173 = vmatpush.msra.mxu0 %v60
    %174 = vmatpush.msra.mxu0 %v59
    %175 = vmatpush.msra.mxu0 %v58
    %176 = vmatpush.msra.mxu0 %v57
    %177 = vmatpush.msra.mxu0 %v56
    %178 = vmatpush.msra.mxu0 %v55
    %179 = vmatmul.f32.gmra.mxu0 %v75
    %v180 = vpop.f32.mrf.mxu0
    %v181 = vadd.f32 %v73, %v180
    %182 = vdwg.mxu0
    %v183 = vmul.f32 %v139, %v181
    %v184 = vrot.slane %v79, 4
    %v186 = vadd.f32 %v184, %v183
    %v187 = vtanh.pop %v186
    %v188 = vsub.f32 %v75, %v187
    %v189 = vmul.f32 %v162, %v188
    %v190 = vadd.f32 %v187, %v189
    %v192 = vrot.slane %v190, 1
    %v193 = vrot.slane %v190, 2
    %v194 = vrot.slane %v190, 3
    %vm195 = vcmask 1040384
    %v196 = vsel %vm195, %v190, %v192
    %vm197 = vcmask 1042434
    %v198 = vsel %vm197, %v193, %v194
    %vm199 = vcmask 1041408
    %v200 = vsel %vm199, %v196, %v198
    %vm201 = vcmask 1041409
    %v202 = vsel %vm201, %v190, %v192
    %vm203 = vcmask 1043459
    %v204 = vsel %vm203, %v193, %v194
    %vm205 = vcmask 1042433
    %v206 = vsel %vm205, %v202, %v204
    %v207 = vrot.slane %v206, 1
    %210 = vst [vmem:[#allocation2] sm:$0x1] %v200
    %211 = vst [vmem:[#allocation2 + $0x8] sm:$0x1] %v207
    %s212 = sadd.s32 0, 1
    %s213 = smul.u32 %s212, 3
    %s214 = smul.addr %s213, 2
    %s215 = scalar_lea.vmem %s0, %s214
    %v216 = vld [vmem:[%s215] sm:$0x3f]
    %217 = vmatpush.msra.mxu0 %v53
    %218 = vmatpush.msra.mxu0 %v51
    %219 = vmatpush.msra.mxu0 %v49
    %220 = vmatpush.msra.mxu0 %v47
    %221 = vmatpush.msra.mxu0 %v45
    %222 = vmatpush.msra.mxu0 %v43
    %223 = vmatpush.msra.mxu0 %v41
    %224 = vmatpush.msra.mxu0 %v39
    %225 = vmatpush.msra.mxu0 %v37
    %226 = vmatpush.msra.mxu0 %v35
    %227 = vmatpush.msra.mxu0 %v33
    %228 = vmatpush.msra.mxu0 %v31
    %229 = vmatpush.msra.mxu0 %v29
    %230 = vmatpush.msra.mxu0 %v27
    %231 = vmatpush.msra.mxu0 %v25
    %232 = vmatpush.msra.mxu0 %v23
    %233 = vmatmul.f32.gmra.mxu0 %v190
    %v234 = vpop.f32.mrf.mxu0
    %v235 = vadd.f32 0.0, %v234
    %236 = vdwg.mxu0
    %237 = vmatpush.msra.mxu0 %v54
    %238 = vmatpush.msra.mxu0 %v52
    %239 = vmatpush.msra.mxu0 %v50
    %240 = vmatpush.msra.mxu0 %v48
    %241 = vmatpush.msra.mxu0 %v46
    %242 = vmatpush.msra.mxu0 %v44
    %243 = vmatpush.msra.mxu0 %v42
    %244 = vmatpush.msra.mxu0 %v40
    %245 = vmatpush.msra.mxu0 %v38
    %246 = vmatpush.msra.mxu0 %v36
    %247 = vmatpush.msra.mxu0 %v34
    %248 = vmatpush.msra.mxu0 %v32
    %249 = vmatpush.msra.mxu0 %v30
    %250 = vmatpush.msra.mxu0 %v28
    %251 = vmatpush.msra.mxu0 %v26
    %252 = vmatpush.msra.mxu0 %v24
    %253 = vmatmul.f32.gmra.mxu0 %v190
    %v254 = vpop.f32.mrf.mxu0
    %v255 = vadd.f32 0.0, %v254
    %256 = vdwg.mxu0
    %v257 = vadd.f32 %v216, %v235
    %v258 = vxor.u32 %v257, 2147483648
    %v259 = vmul.f32 %v258, 1.442695
    %v260 = vpow.pop %v259
    %v261 = vadd.f32 %v260, 1.0
    %v262 = vrcp.pop %v261
    %v263 = vmul.f32 %v261, %v262
    %v264 = vsub.f32 1.0, %v263
    %v265 = vmul.f32 %v262, %v264
    %v266 = vadd.f32 %v262, %v265
    %vm267 = vweird.f32 %v261
    %vm268 = vweird.f32 %v262
    %vm269 = vmor %vm267, %vm268
    %v270 = vsel %vm269, %v262, %v266
    %v271 = vand.u32 2147483647, %v261
    %vm272 = vcmp.eq.f32.partialorder %v271, 8.507059e+37
    %v273 = vand.u32 %v261, 2147483648
    %v274 = vor.u32 1.1754944e-38, %v273
    %v275 = vsel %vm272, %v274, %v270
    %v276 = vmul.f32 1.0, %v275
    %v278 = vrot.slane %v216, 2
    %v280 = vadd.f32 %v278, %v255
    %v281 = vxor.u32 %v280, 2147483648
    %v282 = vmul.f32 %v281, 1.442695
    %v283 = vpow.pop %v282
    %v284 = vadd.f32 %v283, 1.0
    %v285 = vrcp.pop %v284
    %v286 = vmul.f32 %v284, %v285
    %v287 = vsub.f32 1.0, %v286
    %v288 = vmul.f32 %v285, %v287
    %v289 = vadd.f32 %v285, %v288
    %vm290 = vweird.f32 %v284
    %vm291 = vweird.f32 %v285
    %vm292 = vmor %vm290, %vm291
    %v293 = vsel %vm292, %v285, %v289
    %v294 = vand.u32 2147483647, %v284
    %vm295 = vcmp.eq.f32.partialorder %v294, 8.507059e+37
    %v296 = vand.u32 %v284, 2147483648
    %v297 = vor.u32 1.1754944e-38, %v296
    %v298 = vsel %vm295, %v297, %v293
    %v299 = vmul.f32 1.0, %v298
    %300 = vmatpush.msra.mxu0 %v70
    %301 = vmatpush.msra.mxu0 %v69
    %302 = vmatpush.msra.mxu0 %v68
    %303 = vmatpush.msra.mxu0 %v67
    %304 = vmatpush.msra.mxu0 %v66
    %305 = vmatpush.msra.mxu0 %v65
    %306 = vmatpush.msra.mxu0 %v64
    %307 = vmatpush.msra.mxu0 %v63
    %308 = vmatpush.msra.mxu0 %v62
    %309 = vmatpush.msra.mxu0 %v61
    %310 = vmatpush.msra.mxu0 %v60
    %311 = vmatpush.msra.mxu0 %v59
    %312 = vmatpush.msra.mxu0 %v58
    %313 = vmatpush.msra.mxu0 %v57
    %314 = vmatpush.msra.mxu0 %v56
    %315 = vmatpush.msra.mxu0 %v55
    %316 = vmatmul.f32.gmra.mxu0 %v190
    %v317 = vpop.f32.mrf.mxu0
    %v318 = vadd.f32 %v73, %v317
    %319 = vdwg.mxu0
    %v320 = vmul.f32 %v276, %v318
    %v321 = vrot.slane %v216, 4
    %v323 = vadd.f32 %v321, %v320
    %v324 = vtanh.pop %v323
    %v325 = vsub.f32 %v190, %v324
    %v326 = vmul.f32 %v299, %v325
    %v327 = vadd.f32 %v324, %v326
    %v329 = vrot.slane %v327, 1
    %v330 = vrot.slane %v327, 2
    %v331 = vrot.slane %v327, 3
    %v332 = vsel %vm195, %v327, %v329
    %v333 = vsel %vm197, %v330, %v331
    %v334 = vsel %vm199, %v332, %v333
    %v335 = vsel %vm201, %v327, %v329
    %v336 = vsel %vm203, %v330, %v331
    %v337 = vsel %vm205, %v335, %v336
    %v338 = vrot.slane %v337, 1
    %341 = vst [vmem:[#allocation2 + $0x1] sm:$0x1] %v334
    %342 = vst [vmem:[#allocation2 + $0x9] sm:$0x1] %v338
    %s343 = sadd.s32 0, 2
    %s344 = smul.u32 %s343, 3
    %s345 = smul.addr %s344, 2
    %s346 = scalar_lea.vmem %s0, %s345
    %v347 = vld [vmem:[%s346] sm:$0x3f]
    %348 = vmatpush.msra.mxu0 %v53
    %349 = vmatpush.msra.mxu0 %v51
    %350 = vmatpush.msra.mxu0 %v49
    %351 = vmatpush.msra.mxu0 %v47
    %352 = vmatpush.msra.mxu0 %v45
    %353 = vmatpush.msra.mxu0 %v43
    %354 = vmatpush.msra.mxu0 %v41
    %355 = vmatpush.msra.mxu0 %v39
    %356 = vmatpush.msra.mxu0 %v37
    %357 = vmatpush.msra.mxu0 %v35
    %358 = vmatpush.msra.mxu0 %v33
    %359 = vmatpush.msra.mxu0 %v31
    %360 = vmatpush.msra.mxu0 %v29
    %361 = vmatpush.msra.mxu0 %v27
    %362 = vmatpush.msra.mxu0 %v25
    %363 = vmatpush.msra.mxu0 %v23
    %364 = vmatmul.f32.gmra.mxu0 %v327
    %v365 = vpop.f32.mrf.mxu0
    %v366 = vadd.f32 0.0, %v365
    %367 = vdwg.mxu0
    %368 = vmatpush.msra.mxu0 %v54
    %369 = vmatpush.msra.mxu0 %v52
    %370 = vmatpush.msra.mxu0 %v50
    %371 = vmatpush.msra.mxu0 %v48
    %372 = vmatpush.msra.mxu0 %v46
    %373 = vmatpush.msra.mxu0 %v44
    %374 = vmatpush.msra.mxu0 %v42
    %375 = vmatpush.msra.mxu0 %v40
    %376 = vmatpush.msra.mxu0 %v38
    %377 = vmatpush.msra.mxu0 %v36
    %378 = vmatpush.msra.mxu0 %v34
    %379 = vmatpush.msra.mxu0 %v32
    %380 = vmatpush.msra.mxu0 %v30
    %381 = vmatpush.msra.mxu0 %v28
    %382 = vmatpush.msra.mxu0 %v26
    %383 = vmatpush.msra.mxu0 %v24
    %384 = vmatmul.f32.gmra.mxu0 %v327
    %v385 = vpop.f32.mrf.mxu0
    %v386 = vadd.f32 0.0, %v385
    %387 = vdwg.mxu0
    %v388 = vadd.f32 %v347, %v366
    %v389 = vxor.u32 %v388, 2147483648
    %v390 = vmul.f32 %v389, 1.442695
    %v391 = vpow.pop %v390
    %v392 = vadd.f32 %v391, 1.0
    %v393 = vrcp.pop %v392
    %v394 = vmul.f32 %v392, %v393
    %v395 = vsub.f32 1.0, %v394
    %v396 = vmul.f32 %v393, %v395
    %v397 = vadd.f32 %v393, %v396
    %vm398 = vweird.f32 %v392
    %vm399 = vweird.f32 %v393
    %vm400 = vmor %vm398, %vm399
    %v401 = vsel %vm400, %v393, %v397
    %v402 = vand.u32 2147483647, %v392
    %vm403 = vcmp.eq.f32.partialorder %v402, 8.507059e+37
    %v404 = vand.u32 %v392, 2147483648
    %v405 = vor.u32 1.1754944e-38, %v404
    %v406 = vsel %vm403, %v405, %v401
    %v407 = vmul.f32 1.0, %v406
    %v409 = vrot.slane %v347, 2
    %v411 = vadd.f32 %v409, %v386
    %v412 = vxor.u32 %v411, 2147483648
    %v413 = vmul.f32 %v412, 1.442695
    %v414 = vpow.pop %v413
    %v415 = vadd.f32 %v414, 1.0
    %v416 = vrcp.pop %v415
    %v417 = vmul.f32 %v415, %v416
    %v418 = vsub.f32 1.0, %v417
    %v419 = vmul.f32 %v416, %v418
    %v420 = vadd.f32 %v416, %v419
    %vm421 = vweird.f32 %v415
    %vm422 = vweird.f32 %v416
    %vm423 = vmor %vm421, %vm422
    %v424 = vsel %vm423, %v416, %v420
    %v425 = vand.u32 2147483647, %v415
    %vm426 = vcmp.eq.f32.partialorder %v425, 8.507059e+37
    %v427 = vand.u32 %v415, 2147483648
    %v428 = vor.u32 1.1754944e-38, %v427
    %v429 = vsel %vm426, %v428, %v424
    %v430 = vmul.f32 1.0, %v429
    %431 = vmatpush.msra.mxu0 %v70
    %432 = vmatpush.msra.mxu0 %v69
    %433 = vmatpush.msra.mxu0 %v68
    %434 = vmatpush.msra.mxu0 %v67
    %435 = vmatpush.msra.mxu0 %v66
    %436 = vmatpush.msra.mxu0 %v65
    %437 = vmatpush.msra.mxu0 %v64
    %438 = vmatpush.msra.mxu0 %v63
    %439 = vmatpush.msra.mxu0 %v62
    %440 = vmatpush.msra.mxu0 %v61
    %441 = vmatpush.msra.mxu0 %v60
    %442 = vmatpush.msra.mxu0 %v59
    %443 = vmatpush.msra.mxu0 %v58
    %444 = vmatpush.msra.mxu0 %v57
    %445 = vmatpush.msra.mxu0 %v56
    %446 = vmatpush.msra.mxu0 %v55
    %447 = vmatmul.f32.gmra.mxu0 %v327
    %v448 = vpop.f32.mrf.mxu0
    %v449 = vadd.f32 %v73, %v448
    %450 = vdwg.mxu0
    %v451 = vmul.f32 %v407, %v449
    %v452 = vrot.slane %v347, 4
    %v454 = vadd.f32 %v452, %v451
    %v455 = vtanh.pop %v454
    %v456 = vsub.f32 %v327, %v455
    %v457 = vmul.f32 %v430, %v456
    %v458 = vadd.f32 %v455, %v457
    %v460 = vrot.slane %v458, 1
    %v461 = vrot.slane %v458, 2
    %v462 = vrot.slane %v458, 3
    %v463 = vsel %vm195, %v458, %v460
    %v464 = vsel %vm197, %v461, %v462
    %v465 = vsel %vm199, %v463, %v464
    %v466 = vsel %vm201, %v458, %v460
    %v467 = vsel %vm203, %v461, %v462
    %v468 = vsel %vm205, %v466, %v467
    %v469 = vrot.slane %v468, 1
    %472 = vst [vmem:[#allocation2 + $0x2] sm:$0x1] %v465
    %473 = vst [vmem:[#allocation2 + $0xa] sm:$0x1] %v469
    %s474 = sadd.s32 0, 3
    %s475 = smul.u32 %s474, 3
    %s476 = smul.addr %s475, 2
    %s477 = scalar_lea.vmem %s0, %s476
    %v478 = vld [vmem:[%s477] sm:$0x3f]
    %479 = vmatpush.msra.mxu0 %v53
    %480 = vmatpush.msra.mxu0 %v51
    %481 = vmatpush.msra.mxu0 %v49
    %482 = vmatpush.msra.mxu0 %v47
    %483 = vmatpush.msra.mxu0 %v45
    %484 = vmatpush.msra.mxu0 %v43
    %485 = vmatpush.msra.mxu0 %v41
    %486 = vmatpush.msra.mxu0 %v39
    %487 = vmatpush.msra.mxu0 %v37
    %488 = vmatpush.msra.mxu0 %v35
    %489 = vmatpush.msra.mxu0 %v33
    %490 = vmatpush.msra.mxu0 %v31
    %491 = vmatpush.msra.mxu0 %v29
    %492 = vmatpush.msra.mxu0 %v27
    %493 = vmatpush.msra.mxu0 %v25
    %494 = vmatpush.msra.mxu0 %v23
    %495 = vmatmul.f32.gmra.mxu0 %v458
    %v496 = vpop.f32.mrf.mxu0
    %v497 = vadd.f32 0.0, %v496
    %498 = vdwg.mxu0
    %499 = vmatpush.msra.mxu0 %v54
    %500 = vmatpush.msra.mxu0 %v52
    %501 = vmatpush.msra.mxu0 %v50
    %502 = vmatpush.msra.mxu0 %v48
    %503 = vmatpush.msra.mxu0 %v46
    %504 = vmatpush.msra.mxu0 %v44
    %505 = vmatpush.msra.mxu0 %v42
    %506 = vmatpush.msra.mxu0 %v40
    %507 = vmatpush.msra.mxu0 %v38
    %508 = vmatpush.msra.mxu0 %v36
    %509 = vmatpush.msra.mxu0 %v34
    %510 = vmatpush.msra.mxu0 %v32
    %511 = vmatpush.msra.mxu0 %v30
    %512 = vmatpush.msra.mxu0 %v28
    %513 = vmatpush.msra.mxu0 %v26
    %514 = vmatpush.msra.mxu0 %v24
    %515 = vmatmul.f32.gmra.mxu0 %v458
    %v516 = vpop.f32.mrf.mxu0
    %v517 = vadd.f32 0.0, %v516
    %518 = vdwg.mxu0
    %v519 = vadd.f32 %v478, %v497
    %v520 = vxor.u32 %v519, 2147483648
    %v521 = vmul.f32 %v520, 1.442695
    %v522 = vpow.pop %v521
    %v523 = vadd.f32 %v522, 1.0
    %v524 = vrcp.pop %v523
    %v525 = vmul.f32 %v523, %v524
    %v526 = vsub.f32 1.0, %v525
    %v527 = vmul.f32 %v524, %v526
    %v528 = vadd.f32 %v524, %v527
    %vm529 = vweird.f32 %v523
    %vm530 = vweird.f32 %v524
    %vm531 = vmor %vm529, %vm530
    %v532 = vsel %vm531, %v524, %v528
    %v533 = vand.u32 2147483647, %v523
    %vm534 = vcmp.eq.f32.partialorder %v533, 8.507059e+37
    %v535 = vand.u32 %v523, 2147483648
    %v536 = vor.u32 1.1754944e-38, %v535
    %v537 = vsel %vm534, %v536, %v532
    %v538 = vmul.f32 1.0, %v537
    %v540 = vrot.slane %v478, 2
    %v542 = vadd.f32 %v540, %v517
    %v543 = vxor.u32 %v542, 2147483648
    %v544 = vmul.f32 %v543, 1.442695
    %v545 = vpow.pop %v544
    %v546 = vadd.f32 %v545, 1.0
    %v547 = vrcp.pop %v546
    %v548 = vmul.f32 %v546, %v547
    %v549 = vsub.f32 1.0, %v548
    %v550 = vmul.f32 %v547, %v549
    %v551 = vadd.f32 %v547, %v550
    %vm552 = vweird.f32 %v546
    %vm553 = vweird.f32 %v547
    %vm554 = vmor %vm552, %vm553
    %v555 = vsel %vm554, %v547, %v551
    %v556 = vand.u32 2147483647, %v546
    %vm557 = vcmp.eq.f32.partialorder %v556, 8.507059e+37
    %v558 = vand.u32 %v546, 2147483648
    %v559 = vor.u32 1.1754944e-38, %v558
    %v560 = vsel %vm557, %v559, %v555
    %v561 = vmul.f32 1.0, %v560
    %562 = vmatpush.msra.mxu0 %v70
    %563 = vmatpush.msra.mxu0 %v69
    %564 = vmatpush.msra.mxu0 %v68
    %565 = vmatpush.msra.mxu0 %v67
    %566 = vmatpush.msra.mxu0 %v66
    %567 = vmatpush.msra.mxu0 %v65
    %568 = vmatpush.msra.mxu0 %v64
    %569 = vmatpush.msra.mxu0 %v63
    %570 = vmatpush.msra.mxu0 %v62
    %571 = vmatpush.msra.mxu0 %v61
    %572 = vmatpush.msra.mxu0 %v60
    %573 = vmatpush.msra.mxu0 %v59
    %574 = vmatpush.msra.mxu0 %v58
    %575 = vmatpush.msra.mxu0 %v57
    %576 = vmatpush.msra.mxu0 %v56
    %577 = vmatpush.msra.mxu0 %v55
    %578 = vmatmul.f32.gmra.mxu0 %v458
    %v579 = vpop.f32.mrf.mxu0
    %v580 = vadd.f32 %v73, %v579
    %581 = vdwg.mxu0
    %v582 = vmul.f32 %v538, %v580
    %v583 = vrot.slane %v478, 4
    %v585 = vadd.f32 %v583, %v582
    %v586 = vtanh.pop %v585
    %v587 = vsub.f32 %v458, %v586
    %v588 = vmul.f32 %v561, %v587
    %v589 = vadd.f32 %v586, %v588
    %v591 = vrot.slane %v589, 1
    %v592 = vrot.slane %v589, 2
    %v593 = vrot.slane %v589, 3
    %v594 = vsel %vm195, %v589, %v591
    %v595 = vsel %vm197, %v592, %v593
    %v596 = vsel %vm199, %v594, %v595
    %v597 = vsel %vm201, %v589, %v591
    %v598 = vsel %vm203, %v592, %v593
    %v599 = vsel %vm205, %v597, %v598
    %v600 = vrot.slane %v599, 1
    %603 = vst [vmem:[#allocation2 + $0x3] sm:$0x1] %v596
    %604 = vst [vmem:[#allocation2 + $0xb] sm:$0x1] %v600
    %s605 = sadd.s32 0, 4
    %s606 = smul.u32 %s605, 3
    %s607 = smul.addr %s606, 2
    %s608 = scalar_lea.vmem %s0, %s607
    %v609 = vld [vmem:[%s608] sm:$0x3f]
    %610 = vmatpush.msra.mxu0 %v53
    %611 = vmatpush.msra.mxu0 %v51
    %612 = vmatpush.msra.mxu0 %v49
    %613 = vmatpush.msra.mxu0 %v47
    %614 = vmatpush.msra.mxu0 %v45
    %615 = vmatpush.msra.mxu0 %v43
    %616 = vmatpush.msra.mxu0 %v41
    %617 = vmatpush.msra.mxu0 %v39
    %618 = vmatpush.msra.mxu0 %v37
    %619 = vmatpush.msra.mxu0 %v35
    %620 = vmatpush.msra.mxu0 %v33
    %621 = vmatpush.msra.mxu0 %v31
    %622 = vmatpush.msra.mxu0 %v29
    %623 = vmatpush.msra.mxu0 %v27
    %624 = vmatpush.msra.mxu0 %v25
    %625 = vmatpush.msra.mxu0 %v23
    %626 = vmatmul.f32.gmra.mxu0 %v589
    %v627 = vpop.f32.mrf.mxu0
    %v628 = vadd.f32 0.0, %v627
    %629 = vdwg.mxu0
    %630 = vmatpush.msra.mxu0 %v54
    %631 = vmatpush.msra.mxu0 %v52
    %632 = vmatpush.msra.mxu0 %v50
    %633 = vmatpush.msra.mxu0 %v48
    %634 = vmatpush.msra.mxu0 %v46
    %635 = vmatpush.msra.mxu0 %v44
    %636 = vmatpush.msra.mxu0 %v42
    %637 = vmatpush.msra.mxu0 %v40
    %638 = vmatpush.msra.mxu0 %v38
    %639 = vmatpush.msra.mxu0 %v36
    %640 = vmatpush.msra.mxu0 %v34
    %641 = vmatpush.msra.mxu0 %v32
    %642 = vmatpush.msra.mxu0 %v30
    %643 = vmatpush.msra.mxu0 %v28
    %644 = vmatpush.msra.mxu0 %v26
    %645 = vmatpush.msra.mxu0 %v24
    %646 = vmatmul.f32.gmra.mxu0 %v589
    %v647 = vpop.f32.mrf.mxu0
    %v648 = vadd.f32 0.0, %v647
    %649 = vdwg.mxu0
    %v650 = vadd.f32 %v609, %v628
    %v651 = vxor.u32 %v650, 2147483648
    %v652 = vmul.f32 %v651, 1.442695
    %v653 = vpow.pop %v652
    %v654 = vadd.f32 %v653, 1.0
    %v655 = vrcp.pop %v654
    %v656 = vmul.f32 %v654, %v655
    %v657 = vsub.f32 1.0, %v656
    %v658 = vmul.f32 %v655, %v657
    %v659 = vadd.f32 %v655, %v658
    %vm660 = vweird.f32 %v654
    %vm661 = vweird.f32 %v655
    %vm662 = vmor %vm660, %vm661
    %v663 = vsel %vm662, %v655, %v659
    %v664 = vand.u32 2147483647, %v654
    %vm665 = vcmp.eq.f32.partialorder %v664, 8.507059e+37
    %v666 = vand.u32 %v654, 2147483648
    %v667 = vor.u32 1.1754944e-38, %v666
    %v668 = vsel %vm665, %v667, %v663
    %v669 = vmul.f32 1.0, %v668
    %v671 = vrot.slane %v609, 2
    %v673 = vadd.f32 %v671, %v648
    %v674 = vxor.u32 %v673, 2147483648
    %v675 = vmul.f32 %v674, 1.442695
    %v676 = vpow.pop %v675
    %v677 = vadd.f32 %v676, 1.0
    %v678 = vrcp.pop %v677
    %v679 = vmul.f32 %v677, %v678
    %v680 = vsub.f32 1.0, %v679
    %v681 = vmul.f32 %v678, %v680
    %v682 = vadd.f32 %v678, %v681
    %vm683 = vweird.f32 %v677
    %vm684 = vweird.f32 %v678
    %vm685 = vmor %vm683, %vm684
    %v686 = vsel %vm685, %v678, %v682
    %v687 = vand.u32 2147483647, %v677
    %vm688 = vcmp.eq.f32.partialorder %v687, 8.507059e+37
    %v689 = vand.u32 %v677, 2147483648
    %v690 = vor.u32 1.1754944e-38, %v689
    %v691 = vsel %vm688, %v690, %v686
    %v692 = vmul.f32 1.0, %v691
    %693 = vmatpush.msra.mxu0 %v70
    %694 = vmatpush.msra.mxu0 %v69
    %695 = vmatpush.msra.mxu0 %v68
    %696 = vmatpush.msra.mxu0 %v67
    %697 = vmatpush.msra.mxu0 %v66
    %698 = vmatpush.msra.mxu0 %v65
    %699 = vmatpush.msra.mxu0 %v64
    %700 = vmatpush.msra.mxu0 %v63
    %701 = vmatpush.msra.mxu0 %v62
    %702 = vmatpush.msra.mxu0 %v61
    %703 = vmatpush.msra.mxu0 %v60
    %704 = vmatpush.msra.mxu0 %v59
    %705 = vmatpush.msra.mxu0 %v58
    %706 = vmatpush.msra.mxu0 %v57
    %707 = vmatpush.msra.mxu0 %v56
    %708 = vmatpush.msra.mxu0 %v55
    %709 = vmatmul.f32.gmra.mxu0 %v589
    %v710 = vpop.f32.mrf.mxu0
    %v711 = vadd.f32 %v73, %v710
    %712 = vdwg.mxu0
    %v713 = vmul.f32 %v669, %v711
    %v714 = vrot.slane %v609, 4
    %v716 = vadd.f32 %v714, %v713
    %v717 = vtanh.pop %v716
    %v718 = vsub.f32 %v589, %v717
    %v719 = vmul.f32 %v692, %v718
    %v720 = vadd.f32 %v717, %v719
    %v722 = vrot.slane %v720, 1
    %v723 = vrot.slane %v720, 2
    %v724 = vrot.slane %v720, 3
    %v725 = vsel %vm195, %v720, %v722
    %v726 = vsel %vm197, %v723, %v724
    %v727 = vsel %vm199, %v725, %v726
    %v728 = vsel %vm201, %v720, %v722
    %v729 = vsel %vm203, %v723, %v724
    %v730 = vsel %vm205, %v728, %v729
    %v731 = vrot.slane %v730, 1
    %734 = vst [vmem:[#allocation2 + $0x4] sm:$0x1] %v727
    %735 = vst [vmem:[#allocation2 + $0xc] sm:$0x1] %v731
    %s736 = sadd.s32 0, 5
    %s737 = smul.u32 %s736, 3
    %s738 = smul.addr %s737, 2
    %s739 = scalar_lea.vmem %s0, %s738
    %v740 = vld [vmem:[%s739] sm:$0x3f]
    %741 = vmatpush.msra.mxu0 %v53
    %742 = vmatpush.msra.mxu0 %v51
    %743 = vmatpush.msra.mxu0 %v49
    %744 = vmatpush.msra.mxu0 %v47
    %745 = vmatpush.msra.mxu0 %v45
    %746 = vmatpush.msra.mxu0 %v43
    %747 = vmatpush.msra.mxu0 %v41
    %748 = vmatpush.msra.mxu0 %v39
    %749 = vmatpush.msra.mxu0 %v37
    %750 = vmatpush.msra.mxu0 %v35
    %751 = vmatpush.msra.mxu0 %v33
    %752 = vmatpush.msra.mxu0 %v31
    %753 = vmatpush.msra.mxu0 %v29
    %754 = vmatpush.msra.mxu0 %v27
    %755 = vmatpush.msra.mxu0 %v25
    %756 = vmatpush.msra.mxu0 %v23
    %757 = vmatmul.f32.gmra.mxu0 %v720
    %v758 = vpop.f32.mrf.mxu0
    %v759 = vadd.f32 0.0, %v758
    %760 = vdwg.mxu0
    %761 = vmatpush.msra.mxu0 %v54
    %762 = vmatpush.msra.mxu0 %v52
    %763 = vmatpush.msra.mxu0 %v50
    %764 = vmatpush.msra.mxu0 %v48
    %765 = vmatpush.msra.mxu0 %v46
    %766 = vmatpush.msra.mxu0 %v44
    %767 = vmatpush.msra.mxu0 %v42
    %768 = vmatpush.msra.mxu0 %v40
    %769 = vmatpush.msra.mxu0 %v38
    %770 = vmatpush.msra.mxu0 %v36
    %771 = vmatpush.msra.mxu0 %v34
    %772 = vmatpush.msra.mxu0 %v32
    %773 = vmatpush.msra.mxu0 %v30
    %774 = vmatpush.msra.mxu0 %v28
    %775 = vmatpush.msra.mxu0 %v26
    %776 = vmatpush.msra.mxu0 %v24
    %777 = vmatmul.f32.gmra.mxu0 %v720
    %v778 = vpop.f32.mrf.mxu0
    %v779 = vadd.f32 0.0, %v778
    %780 = vdwg.mxu0
    %v781 = vadd.f32 %v740, %v759
    %v782 = vxor.u32 %v781, 2147483648
    %v783 = vmul.f32 %v782, 1.442695
    %v784 = vpow.pop %v783
    %v785 = vadd.f32 %v784, 1.0
    %v786 = vrcp.pop %v785
    %v787 = vmul.f32 %v785, %v786
    %v788 = vsub.f32 1.0, %v787
    %v789 = vmul.f32 %v786, %v788
    %v790 = vadd.f32 %v786, %v789
    %vm791 = vweird.f32 %v785
    %vm792 = vweird.f32 %v786
    %vm793 = vmor %vm791, %vm792
    %v794 = vsel %vm793, %v786, %v790
    %v795 = vand.u32 2147483647, %v785
    %vm796 = vcmp.eq.f32.partialorder %v795, 8.507059e+37
    %v797 = vand.u32 %v785, 2147483648
    %v798 = vor.u32 1.1754944e-38, %v797
    %v799 = vsel %vm796, %v798, %v794
    %v800 = vmul.f32 1.0, %v799
    %v802 = vrot.slane %v740, 2
    %v804 = vadd.f32 %v802, %v779
    %v805 = vxor.u32 %v804, 2147483648
    %v806 = vmul.f32 %v805, 1.442695
    %v807 = vpow.pop %v806
    %v808 = vadd.f32 %v807, 1.0
    %v809 = vrcp.pop %v808
    %v810 = vmul.f32 %v808, %v809
    %v811 = vsub.f32 1.0, %v810
    %v812 = vmul.f32 %v809, %v811
    %v813 = vadd.f32 %v809, %v812
    %vm814 = vweird.f32 %v808
    %vm815 = vweird.f32 %v809
    %vm816 = vmor %vm814, %vm815
    %v817 = vsel %vm816, %v809, %v813
    %v818 = vand.u32 2147483647, %v808
    %vm819 = vcmp.eq.f32.partialorder %v818, 8.507059e+37
    %v820 = vand.u32 %v808, 2147483648
    %v821 = vor.u32 1.1754944e-38, %v820
    %v822 = vsel %vm819, %v821, %v817
    %v823 = vmul.f32 1.0, %v822
    %824 = vmatpush.msra.mxu0 %v70
    %825 = vmatpush.msra.mxu0 %v69
    %826 = vmatpush.msra.mxu0 %v68
    %827 = vmatpush.msra.mxu0 %v67
    %828 = vmatpush.msra.mxu0 %v66
    %829 = vmatpush.msra.mxu0 %v65
    %830 = vmatpush.msra.mxu0 %v64
    %831 = vmatpush.msra.mxu0 %v63
    %832 = vmatpush.msra.mxu0 %v62
    %833 = vmatpush.msra.mxu0 %v61
    %834 = vmatpush.msra.mxu0 %v60
    %835 = vmatpush.msra.mxu0 %v59
    %836 = vmatpush.msra.mxu0 %v58
    %837 = vmatpush.msra.mxu0 %v57
    %838 = vmatpush.msra.mxu0 %v56
    %839 = vmatpush.msra.mxu0 %v55
    %840 = vmatmul.f32.gmra.mxu0 %v720
    %v841 = vpop.f32.mrf.mxu0
    %v842 = vadd.f32 %v73, %v841
    %843 = vdwg.mxu0
    %v844 = vmul.f32 %v800, %v842
    %v845 = vrot.slane %v740, 4
    %v847 = vadd.f32 %v845, %v844
    %v848 = vtanh.pop %v847
    %v849 = vsub.f32 %v720, %v848
    %v850 = vmul.f32 %v823, %v849
    %v851 = vadd.f32 %v848, %v850
    %v853 = vrot.slane %v851, 1
    %v854 = vrot.slane %v851, 2
    %v855 = vrot.slane %v851, 3
    %v856 = vsel %vm195, %v851, %v853
    %v857 = vsel %vm197, %v854, %v855
    %v858 = vsel %vm199, %v856, %v857
    %v859 = vsel %vm201, %v851, %v853
    %v860 = vsel %vm203, %v854, %v855
    %v861 = vsel %vm205, %v859, %v860
    %v862 = vrot.slane %v861, 1
    %865 = vst [vmem:[#allocation2 + $0x5] sm:$0x1] %v858
    %866 = vst [vmem:[#allocation2 + $0xd] sm:$0x1] %v862
    %s867 = sadd.s32 0, 6
    %s868 = smul.u32 %s867, 3
    %s869 = smul.addr %s868, 2
    %s870 = scalar_lea.vmem %s0, %s869
    %v871 = vld [vmem:[%s870] sm:$0x3f]
    %872 = vmatpush.msra.mxu0 %v53
    %873 = vmatpush.msra.mxu0 %v51
    %874 = vmatpush.msra.mxu0 %v49
    %875 = vmatpush.msra.mxu0 %v47
    %876 = vmatpush.msra.mxu0 %v45
    %877 = vmatpush.msra.mxu0 %v43
    %878 = vmatpush.msra.mxu0 %v41
    %879 = vmatpush.msra.mxu0 %v39
    %880 = vmatpush.msra.mxu0 %v37
    %881 = vmatpush.msra.mxu0 %v35
    %882 = vmatpush.msra.mxu0 %v33
    %883 = vmatpush.msra.mxu0 %v31
    %884 = vmatpush.msra.mxu0 %v29
    %885 = vmatpush.msra.mxu0 %v27
    %886 = vmatpush.msra.mxu0 %v25
    %887 = vmatpush.msra.mxu0 %v23
    %888 = vmatmul.f32.gmra.mxu0 %v851
    %v889 = vpop.f32.mrf.mxu0
    %v890 = vadd.f32 0.0, %v889
    %891 = vdwg.mxu0
    %892 = vmatpush.msra.mxu0 %v54
    %893 = vmatpush.msra.mxu0 %v52
    %894 = vmatpush.msra.mxu0 %v50
    %895 = vmatpush.msra.mxu0 %v48
    %896 = vmatpush.msra.mxu0 %v46
    %897 = vmatpush.msra.mxu0 %v44
    %898 = vmatpush.msra.mxu0 %v42
    %899 = vmatpush.msra.mxu0 %v40
    %900 = vmatpush.msra.mxu0 %v38
    %901 = vmatpush.msra.mxu0 %v36
    %902 = vmatpush.msra.mxu0 %v34
    %903 = vmatpush.msra.mxu0 %v32
    %904 = vmatpush.msra.mxu0 %v30
    %905 = vmatpush.msra.mxu0 %v28
    %906 = vmatpush.msra.mxu0 %v26
    %907 = vmatpush.msra.mxu0 %v24
    %908 = vmatmul.f32.gmra.mxu0 %v851
    %v909 = vpop.f32.mrf.mxu0
    %v910 = vadd.f32 0.0, %v909
    %911 = vdwg.mxu0
    %v912 = vadd.f32 %v871, %v890
    %v913 = vxor.u32 %v912, 2147483648
    %v914 = vmul.f32 %v913, 1.442695
    %v915 = vpow.pop %v914
    %v916 = vadd.f32 %v915, 1.0
    %v917 = vrcp.pop %v916
    %v918 = vmul.f32 %v916, %v917
    %v919 = vsub.f32 1.0, %v918
    %v920 = vmul.f32 %v917, %v919
    %v921 = vadd.f32 %v917, %v920
    %vm922 = vweird.f32 %v916
    %vm923 = vweird.f32 %v917
    %vm924 = vmor %vm922, %vm923
    %v925 = vsel %vm924, %v917, %v921
    %v926 = vand.u32 2147483647, %v916
    %vm927 = vcmp.eq.f32.partialorder %v926, 8.507059e+37
    %v928 = vand.u32 %v916, 2147483648
    %v929 = vor.u32 1.1754944e-38, %v928
    %v930 = vsel %vm927, %v929, %v925
    %v931 = vmul.f32 1.0, %v930
    %v933 = vrot.slane %v871, 2
    %v935 = vadd.f32 %v933, %v910
    %v936 = vxor.u32 %v935, 2147483648
    %v937 = vmul.f32 %v936, 1.442695
    %v938 = vpow.pop %v937
    %v939 = vadd.f32 %v938, 1.0
    %v940 = vrcp.pop %v939
    %v941 = vmul.f32 %v939, %v940
    %v942 = vsub.f32 1.0, %v941
    %v943 = vmul.f32 %v940, %v942
    %v944 = vadd.f32 %v940, %v943
    %vm945 = vweird.f32 %v939
    %vm946 = vweird.f32 %v940
    %vm947 = vmor %vm945, %vm946
    %v948 = vsel %vm947, %v940, %v944
    %v949 = vand.u32 2147483647, %v939
    %vm950 = vcmp.eq.f32.partialorder %v949, 8.507059e+37
    %v951 = vand.u32 %v939, 2147483648
    %v952 = vor.u32 1.1754944e-38, %v951
    %v953 = vsel %vm950, %v952, %v948
    %v954 = vmul.f32 1.0, %v953
    %955 = vmatpush.msra.mxu0 %v70
    %956 = vmatpush.msra.mxu0 %v69
    %957 = vmatpush.msra.mxu0 %v68
    %958 = vmatpush.msra.mxu0 %v67
    %959 = vmatpush.msra.mxu0 %v66
    %960 = vmatpush.msra.mxu0 %v65
    %961 = vmatpush.msra.mxu0 %v64
    %962 = vmatpush.msra.mxu0 %v63
    %963 = vmatpush.msra.mxu0 %v62
    %964 = vmatpush.msra.mxu0 %v61
    %965 = vmatpush.msra.mxu0 %v60
    %966 = vmatpush.msra.mxu0 %v59
    %967 = vmatpush.msra.mxu0 %v58
    %968 = vmatpush.msra.mxu0 %v57
    %969 = vmatpush.msra.mxu0 %v56
    %970 = vmatpush.msra.mxu0 %v55
    %971 = vmatmul.f32.gmra.mxu0 %v851
    %v972 = vpop.f32.mrf.mxu0
    %v973 = vadd.f32 %v73, %v972
    %974 = vdwg.mxu0
    %v975 = vmul.f32 %v931, %v973
    %v976 = vrot.slane %v871, 4
    %v978 = vadd.f32 %v976, %v975
    %v979 = vtanh.pop %v978
    %v980 = vsub.f32 %v851, %v979
    %v981 = vmul.f32 %v954, %v980
    %v982 = vadd.f32 %v979, %v981
    %v984 = vrot.slane %v982, 1
    %v985 = vrot.slane %v982, 2
    %v986 = vrot.slane %v982, 3
    %v987 = vsel %vm195, %v982, %v984
    %v988 = vsel %vm197, %v985, %v986
    %v989 = vsel %vm199, %v987, %v988
    %v990 = vsel %vm201, %v982, %v984
    %v991 = vsel %vm203, %v985, %v986
    %v992 = vsel %vm205, %v990, %v991
    %v993 = vrot.slane %v992, 1
    %996 = vst [vmem:[#allocation2 + $0x6] sm:$0x1] %v989
    %997 = vst [vmem:[#allocation2 + $0xe] sm:$0x1] %v993
    %s998 = sadd.s32 0, 7
    %s999 = smul.u32 %s998, 3
    %s1000 = smul.addr %s999, 2
    %s1001 = scalar_lea.vmem %s0, %s1000
    %v1002 = vld [vmem:[%s1001] sm:$0x3f]
    %1003 = vmatpush.msra.mxu0 %v53
    %1004 = vmatpush.msra.mxu0 %v51
    %1005 = vmatpush.msra.mxu0 %v49
    %1006 = vmatpush.msra.mxu0 %v47
    %1007 = vmatpush.msra.mxu0 %v45
    %1008 = vmatpush.msra.mxu0 %v43
    %1009 = vmatpush.msra.mxu0 %v41
    %1010 = vmatpush.msra.mxu0 %v39
    %1011 = vmatpush.msra.mxu0 %v37
    %1012 = vmatpush.msra.mxu0 %v35
    %1013 = vmatpush.msra.mxu0 %v33
    %1014 = vmatpush.msra.mxu0 %v31
    %1015 = vmatpush.msra.mxu0 %v29
    %1016 = vmatpush.msra.mxu0 %v27
    %1017 = vmatpush.msra.mxu0 %v25
    %1018 = vmatpush.msra.mxu0 %v23
    %1019 = vmatmul.f32.gmra.mxu0 %v982
    %v1020 = vpop.f32.mrf.mxu0
    %v1021 = vadd.f32 0.0, %v1020
    %1022 = vdwg.mxu0
    %1023 = vmatpush.msra.mxu0 %v54
    %1024 = vmatpush.msra.mxu0 %v52
    %1025 = vmatpush.msra.mxu0 %v50
    %1026 = vmatpush.msra.mxu0 %v48
    %1027 = vmatpush.msra.mxu0 %v46
    %1028 = vmatpush.msra.mxu0 %v44
    %1029 = vmatpush.msra.mxu0 %v42
    %1030 = vmatpush.msra.mxu0 %v40
    %1031 = vmatpush.msra.mxu0 %v38
    %1032 = vmatpush.msra.mxu0 %v36
    %1033 = vmatpush.msra.mxu0 %v34
    %1034 = vmatpush.msra.mxu0 %v32
    %1035 = vmatpush.msra.mxu0 %v30
    %1036 = vmatpush.msra.mxu0 %v28
    %1037 = vmatpush.msra.mxu0 %v26
    %1038 = vmatpush.msra.mxu0 %v24
    %1039 = vmatmul.f32.gmra.mxu0 %v982
    %v1040 = vpop.f32.mrf.mxu0
    %v1041 = vadd.f32 0.0, %v1040
    %1042 = vdwg.mxu0
    %v1043 = vadd.f32 %v1002, %v1021
    %v1044 = vxor.u32 %v1043, 2147483648
    %v1045 = vmul.f32 %v1044, 1.442695
    %v1046 = vpow.pop %v1045
    %v1047 = vadd.f32 %v1046, 1.0
    %v1048 = vrcp.pop %v1047
    %v1049 = vmul.f32 %v1047, %v1048
    %v1050 = vsub.f32 1.0, %v1049
    %v1051 = vmul.f32 %v1048, %v1050
    %v1052 = vadd.f32 %v1048, %v1051
    %vm1053 = vweird.f32 %v1047
    %vm1054 = vweird.f32 %v1048
    %vm1055 = vmor %vm1053, %vm1054
    %v1056 = vsel %vm1055, %v1048, %v1052
    %v1057 = vand.u32 2147483647, %v1047
    %vm1058 = vcmp.eq.f32.partialorder %v1057, 8.507059e+37
    %v1059 = vand.u32 %v1047, 2147483648
    %v1060 = vor.u32 1.1754944e-38, %v1059
    %v1061 = vsel %vm1058, %v1060, %v1056
    %v1062 = vmul.f32 1.0, %v1061
    %v1064 = vrot.slane %v1002, 2
    %v1066 = vadd.f32 %v1064, %v1041
    %v1067 = vxor.u32 %v1066, 2147483648
    %v1068 = vmul.f32 %v1067, 1.442695
    %v1069 = vpow.pop %v1068
    %v1070 = vadd.f32 %v1069, 1.0
    %v1071 = vrcp.pop %v1070
    %v1072 = vmul.f32 %v1070, %v1071
    %v1073 = vsub.f32 1.0, %v1072
    %v1074 = vmul.f32 %v1071, %v1073
    %v1075 = vadd.f32 %v1071, %v1074
    %vm1076 = vweird.f32 %v1070
    %vm1077 = vweird.f32 %v1071
    %vm1078 = vmor %vm1076, %vm1077
    %v1079 = vsel %vm1078, %v1071, %v1075
    %v1080 = vand.u32 2147483647, %v1070
    %vm1081 = vcmp.eq.f32.partialorder %v1080, 8.507059e+37
    %v1082 = vand.u32 %v1070, 2147483648
    %v1083 = vor.u32 1.1754944e-38, %v1082
    %v1084 = vsel %vm1081, %v1083, %v1079
    %v1085 = vmul.f32 1.0, %v1084
    %1086 = vmatpush.msra.mxu0 %v70
    %1087 = vmatpush.msra.mxu0 %v69
    %1088 = vmatpush.msra.mxu0 %v68
    %1089 = vmatpush.msra.mxu0 %v67
    %1090 = vmatpush.msra.mxu0 %v66
    %1091 = vmatpush.msra.mxu0 %v65
    %1092 = vmatpush.msra.mxu0 %v64
    %1093 = vmatpush.msra.mxu0 %v63
    %1094 = vmatpush.msra.mxu0 %v62
    %1095 = vmatpush.msra.mxu0 %v61
    %1096 = vmatpush.msra.mxu0 %v60
    %1097 = vmatpush.msra.mxu0 %v59
    %1098 = vmatpush.msra.mxu0 %v58
    %1099 = vmatpush.msra.mxu0 %v57
    %1100 = vmatpush.msra.mxu0 %v56
    %1101 = vmatpush.msra.mxu0 %v55
    %1102 = vmatmul.f32.gmra.mxu0 %v982
    %v1103 = vpop.f32.mrf.mxu0
    %v1104 = vadd.f32 %v73, %v1103
    %1105 = vdwg.mxu0
    %v1106 = vmul.f32 %v1062, %v1104
    %v1107 = vrot.slane %v1002, 4
    %v1109 = vadd.f32 %v1107, %v1106
    %v1110 = vtanh.pop %v1109
    %v1111 = vsub.f32 %v982, %v1110
    %v1112 = vmul.f32 %v1085, %v1111
    %v1113 = vadd.f32 %v1110, %v1112
    %v1115 = vrot.slane %v1113, 1
    %v1116 = vrot.slane %v1113, 2
    %v1117 = vrot.slane %v1113, 3
    %v1118 = vsel %vm195, %v1113, %v1115
    %v1119 = vsel %vm197, %v1116, %v1117
    %v1120 = vsel %vm199, %v1118, %v1119
    %v1121 = vsel %vm201, %v1113, %v1115
    %v1122 = vsel %vm203, %v1116, %v1117
    %v1123 = vsel %vm205, %v1121, %v1122
    %v1124 = vrot.slane %v1123, 1
    %1127 = vst [vmem:[#allocation2 + $0x7] sm:$0x1] %v1120
    %1128 = vst [vmem:[#allocation2 + $0xf] sm:$0x1] %v1124
    %v1129 = vld [vmem:[#allocation2] sm:$0xff]
    %v1130 = vld [vmem:[#allocation2 + $0x8] sm:$0xff]
    %1131 = vst [vmem:[#allocation4] sm:$0xff] %v1129
    %1132 = vst [vmem:[#allocation4 + $0x8] sm:$0xff] %v1130
    %1133 = vst [vmem:[#allocation3] sm:$0x3] %v1113
    // Predicated region
    $region18: #{encoder_rnn_forward.1} parent=1 // pred_check
      %p1134 = pneg %p18
    $region19: #{encoder_rnn_forward.1} parent=1 // pred_check_branch
      %1136 = sbr.rel (%p1134) target = $region21
    $region20: #{encoder_rnn_forward.1} parent=1 // pred_region
      %1137 = vst [vmem:[#allocation6] sm:$0x3] %v1113
    $region21: #{encoder_rnn_forward.1} parent=1 // pred_fallthru
      _
    // Predicated region
    $region22: #{encoder_rnn_forward.1} parent=1 // pred_check
      _
    $region23: #{encoder_rnn_forward.1} parent=1 // pred_check_branch
      %1139 = sbr.rel (0) target = $region25
    $region24: #{encoder_rnn_forward.1} parent=1 // pred_region
      %1141 = vsyncadd [#allocation5], 0
      %s1142 = sshll.u32 [#allocation4], 4
      %s1143 = int_to_ptr.vmem [resolvable:$true] %s1142
      %s1144 = sshll.u32 %s3, 4
      %s1145 = int_to_ptr.hbm [resolvable:$true] %s1144
      %1150 = dma.vmem_to_hbm [thread:$0]  %s1143, 256, %s1145, [#allocation5], 128, 128, 8
    $region25: #{encoder_rnn_forward.1} parent=1 // pred_fallthru
      _
    // Predicated region
    $region26: #{encoder_rnn_forward.1} parent=1 // pred_check
      _
    $region27: #{encoder_rnn_forward.1} parent=1 // pred_check_branch
      %1152 = sbr.rel (0) target = $region29
    $region28: #{encoder_rnn_forward.1} parent=1 // pred_region
      %1154 = vsyncadd [#allocation7], 0
      %s1156 = sshll.u32 [#allocation6], 4
      %s1157 = int_to_ptr.vmem [resolvable:$true] %s1156
      %s1158 = sshll.u32 %s4, 4
      %s1159 = int_to_ptr.hbm [resolvable:$true] %s1158
      %1161 = dma.vmem_to_hbm [thread:$0]  %s1157, 32, %s1159, [#allocation7]
    $region29: #{encoder_rnn_forward.1} parent=1 // pred_fallthru
      _
    // Predicated region
    $region30: #{encoder_rnn_forward.1} parent=1 // pred_check
      _
    $region31: #{encoder_rnn_forward.1} parent=1 // pred_check_branch
      %1163 = sbr.rel (0) target = $region33
    $region32: #{encoder_rnn_forward.1} parent=1 // pred_region
      %1165 = dma.done [#allocation5], 256
    $region33: #{encoder_rnn_forward.1} parent=1 // pred_fallthru
      _
    // Predicated region
    $region34: #{encoder_rnn_forward.1} parent=1 // pred_check
      _
    $region35: #{encoder_rnn_forward.1} parent=1 // pred_check_branch
      %1167 = sbr.rel (0) target = $region37
    $region36: #{encoder_rnn_forward.1} parent=1 // pred_region
      %1169 = dma.done [#allocation7], 32
    $region37: #{encoder_rnn_forward.1} parent=1 // pred_fallthru
      _
    %1170 = vsyncpa [#allocation5], 1
    %1171 = vsyncpa [#allocation7], 1

</llo_original>
